<compile_context>
chip_gen: v6e
topology: v6e:2x2x1
jax: 0.10.0
libtpu: 0.0.40
codegen_flags: <defaults>
</compile_context>

<pallas_src>
import jax
import jax.numpy as jnp
import numpy as np
from jax.experimental import pallas as pl
from jax.experimental.pallas import tpu as pltpu

CIN = 3
CMID = 8
COUT = 1
EPS = 1e-5


def _round_up(n, m):
    return ((n + m - 1) // m) * m


def make_fused_kernel(Wp, L_pad, n_valid):
    """Wp = padded image width, L_pad = lane-padded flattened padded-grid size,
    n_valid = true number of output pixels (H*W) used as the BN divisor."""
    inv_n = 1.0 / float(n_valid)
    # Tap t = (dy+1)*3 + (dx+1); flat-grid offset of that tap is dy*Wp + dx.
    # roll(x, k)[f] == x[(f - k) % L]  =>  to read x[f + s] use k = (-s) % L.
    shifts = [(-(dy * Wp + dx)) % L_pad for dy in (-1, 0, 1) for dx in (-1, 0, 1)]

    def kernel(x_ref, w_ref, prm_ref, wb4_ref, msk_ref, o_ref):
        # x_ref  : (8, L_pad)   rows 0..2 = padded x1, 3..5 = padded x2, 6..7 = 0
        # w_ref  : (9, 16, 8)   per-tap block-diagonal conv weights [W1 0; 0 W2]
        # prm_ref: (16, 3)      columns: bias | gamma | beta (conv1|conv2 stacked)
        # wb4_ref: (1, 9)       [w4 (8 lanes) | b4]
        # msk_ref: (1, L_pad)   1.0 at true output pixels, 0.0 at halo/lane pad
        # o_ref  : (1, L_pad)
        x = x_ref[...]

        # In-kernel im2col: 9 taps via lane rolls (XLU), each feeding one small
        # MXU matmul. acc is the pre-ReLU output of conv1|conv2, (16, L_pad).
        acc = None
        for t in range(9):
            xt = x if shifts[t] == 0 else pltpu.roll(x, shifts[t], 1)
            d = jnp.dot(w_ref[t], xt, preferred_element_type=jnp.float32)
            acc = d if acc is None else acc + d

        bias = prm_ref[:, 0:1]
        gamma = prm_ref[:, 1:2]
        beta = prm_ref[:, 2:3]
        mask = msk_ref[...]                       # (1, L_pad), broadcasts over rows

        # relu(conv + b); zero invalid (halo / lane-pad) positions once so the
        # BN statistics below only see the H*W true pixels.
        vr = jnp.maximum(acc + bias, 0.0) * mask  # (16, L_pad)

        # Training-mode BatchNorm2d: per-channel batch stats, biased variance.
        m = jnp.sum(vr, axis=-1, keepdims=True) * inv_n
        ex2 = jnp.sum(vr * vr, axis=-1, keepdims=True) * inv_n
        var = jnp.maximum(ex2 - m * m, 0.0)       # clamp for numerical safety
        vn = gamma * (vr - m) * jax.lax.rsqrt(var + EPS) + beta

        # v8 = relu(bn1(v1) + bn2(v2)); final 1x1 conv as an MXU matmul.
        v8 = jnp.maximum(vn[0:CMID, :] + vn[CMID:2 * CMID, :], 0.0)   # (8, L_pad)
        w4 = wb4_ref[:, 0:CMID]                   # (1, 8)
        b4 = wb4_ref[0:1, CMID:CMID + 1]          # (1, 1)
        o_ref[...] = jnp.dot(w4, v8, preferred_element_type=jnp.float32) + b4

    return kernel


def prepare_params(p):
    """One-time packing of module parameters into kernel-ready arrays."""
    # Per-tap block-diagonal weights: w[t, 0:8, 0:3] = conv1 tap (ki,kj),
    # w[t, 8:16, 3:6] = conv2 tap; columns 6..7 stay zero (match zero slab rows).
    w1t = jnp.transpose(p["w1"], (2, 3, 0, 1)).reshape(9, CMID, CIN)
    w2t = jnp.transpose(p["w2"], (2, 3, 0, 1)).reshape(9, CMID, CIN)
    w = jnp.zeros((9, 2 * CMID, 8), jnp.float32)
    w = w.at[:, 0:CMID, 0:CIN].set(w1t)
    w = w.at[:, CMID:2 * CMID, CIN:2 * CIN].set(w2t)

    prm = jnp.stack(
        [jnp.concatenate([p["b1"], p["b2"]]),
         jnp.concatenate([p["g1"], p["g2"]]),
         jnp.concatenate([p["be1"], p["be2"]])], axis=1).astype(jnp.float32)

    wb4 = jnp.concatenate(
        [p["w4"].reshape(CMID), p["b4"]]).reshape(1, CMID + 1).astype(jnp.float32)

    return {"w": w.astype(jnp.float32), "prm": prm, "wb4": wb4}


def _valid_mask(H, W, L_pad):
    """Compile-time constant (1, L_pad) mask: 1.0 at true output pixels."""
    Hp, Wp = H + 2, W + 2
    m = np.zeros((Hp, Wp), np.float32)
    m[1:H + 1, 1:W + 1] = 1.0
    out = np.zeros((1, L_pad), np.float32)
    out[0, :Hp * Wp] = m.reshape(-1)
    return out


@jax.jit
def model_forward(x1, x2, packed):
    n, c, H, W = x1.shape
    # BN statistics are per-sample here; the module is specified with batch 1,
    # so guard against silently diverging semantics for N > 1.
    assert n == 1 and c == CIN, (n, c)
    Hp, Wp = H + 2, W + 2
    L = Hp * Wp
    L_pad = _round_up(L, 128)

    # One lane-dense slab holding both zero-padded inputs: (8, L_pad).
    xcat = jnp.concatenate([x1[0], x2[0]], axis=0)          # (6, H, W)
    xp = jnp.pad(xcat, ((0, 2), (1, 1), (1, 1)))            # (8, Hp, Wp)
    xf = xp.reshape(2 * CIN + 2, L).astype(jnp.float32)
    if L_pad != L:
        xf = jnp.pad(xf, ((0, 0), (0, L_pad - L)))
    mask = jnp.asarray(_valid_mask(H, W, L_pad))             # baked constant

    out = pl.pallas_call(
        make_fused_kernel(Wp, L_pad, H * W),
        out_shape=jax.ShapeDtypeStruct((COUT, L_pad), jnp.float32),
        in_specs=[pl.BlockSpec(memory_space=pltpu.MemorySpace.VMEM)] * 5,
        out_specs=pl.BlockSpec(memory_space=pltpu.MemorySpace.VMEM),
    )(xf, packed["w"], packed["prm"], packed["wb4"], mask)

    # Raw kernel output carries junk at halo / lane-pad positions; this slice
    # is what makes the result exact -- keep it if fusing downstream consumers.
    return out[0, :L].reshape(Hp, Wp)[1:H + 1, 1:W + 1].reshape(1, COUT, H, W)


def reference_forward(x1, x2, p):
    # Pure-JAX reference mirroring the PyTorch forward (training-mode BN).
    def conv(x, w, b, pad):
        y = jax.lax.conv_general_dilated(
            x, w, (1, 1), [(pad, pad), (pad, pad)],
            dimension_numbers=("NCHW", "OIHW", "NCHW"))
        return y + b[None, :, None, None]

    def bn(v, g, be):
        m = v.mean(axis=(0, 2, 3), keepdims=True)
        var = ((v - m) ** 2).mean(axis=(0, 2, 3), keepdims=True)
        return g[None, :, None, None] * (v - m) / jnp.sqrt(var + EPS) \
            + be[None, :, None, None]

    v1 = jax.nn.relu(conv(x1, p["w1"], p["b1"], 1))
    v2 = jax.nn.relu(conv(x2, p["w2"], p["b2"], 1))
    v8 = jax.nn.relu(bn(v1, p["g1"], p["be1"]) + bn(v2, p["g2"], p["be2"]))
    return conv(v8, p["w4"], p["b4"], 0)


def init_params(key):
    ks = jax.random.split(key, 10)
    n = lambda k, s, sc=0.1: (jax.random.normal(k, s) * sc).astype(jnp.float32)
    return {
        "w1": n(ks[0], (CMID, CIN, 3, 3)), "b1": n(ks[1], (CMID,)),
        "w2": n(ks[2], (CMID, CIN, 3, 3)), "b2": n(ks[3], (CMID,)),
        "w4": n(ks[4], (COUT, CMID, 1, 1)), "b4": n(ks[5], (COUT,)),
        "g1": 1.0 + n(ks[6], (CMID,)), "be1": n(ks[7], (CMID,)),
        "g2": 1.0 + n(ks[8], (CMID,)), "be2": n(ks[9], (CMID,)),
        # NOTE: conv3 (8x3x1x1) exists in the module but its result (v4) never
        # feeds the returned value, so it is intentionally not materialized.
    }


if __name__ == "__main__":
    key = jax.random.PRNGKey(0)
    kx1, kx2, kp = jax.random.split(key, 3)
    params = init_params(kp)
    packed = prepare_params(params)   # one-time packing, hoisted out of forward

    # Primary check (small shape consistent with the module's 1x3xHxW inputs).
    x1 = jax.random.normal(kx1, (1, CIN, 16, 16), dtype=jnp.float32)
    x2 = jax.random.normal(kx2, (1, CIN, 16, 16), dtype=jnp.float32)
    out = jax.block_until_ready(model_forward(x1, x2, packed))
    ref = jax.block_until_ready(reference_forward(x1, x2, params))
    assert out.shape == (1, COUT, 16, 16), out.shape
    assert jnp.allclose(out, ref, atol=1e-3, rtol=1e-3), \
        float(jnp.max(jnp.abs(out - ref)))

    # Secondary check at a different, non-aligned spatial size.
    x1b = jax.random.normal(jax.random.fold_in(kx1, 1), (1, CIN, 10, 10),
                            dtype=jnp.float32)
    x2b = jax.random.normal(jax.random.fold_in(kx2, 1), (1, CIN, 10, 10),
                            dtype=jnp.float32)
    outb = jax.block_until_ready(model_forward(x1b, x2b, packed))
    refb = jax.block_until_ready(reference_forward(x1b, x2b, params))
    assert outb.shape == (1, COUT, 10, 10), outb.shape
    assert jnp.allclose(outb, refb, atol=1e-3, rtol=1e-3), \
        float(jnp.max(jnp.abs(outb - refb)))

    print("KERNEL_OK")
</pallas_src>

<mosaic_0001>
module attributes {stable_mosaic.version = 11 : i64} {
  func.func @kernel(%arg0: memref<8x384xf32, #tpu.memory_space<vmem>>, %arg1: memref<9x16x8xf32, #tpu.memory_space<vmem>>, %arg2: memref<16x3xf32, #tpu.memory_space<vmem>>, %arg3: memref<1x9xf32, #tpu.memory_space<vmem>>, %arg4: memref<1x384xf32, #tpu.memory_space<vmem>>, %arg5: memref<1x384xf32, #tpu.memory_space<vmem>>) attributes {dimension_semantics = [], scalar_prefetch = 0 : i64, scratch_operands = 0 : i64, tpu.core_type = #tpu.core_type<tc>} {
    %c0 = arith.constant 0 : index
    %c0_0 = arith.constant 0 : index
    %0 = vector.load %arg0[%c0, %c0_0] : memref<8x384xf32, #tpu.memory_space<vmem>>, vector<8x384xf32>
    %c19_i32 = arith.constant 19 : i32
    %1 = tpu.dynamic_rotate %0 by %c19_i32 dim 1 : vector<8x384xf32>, i32 -> vector<8x384xf32>
    %c0_1 = arith.constant 0 : index
    %c0_2 = arith.constant 0 : index
    %c0_3 = arith.constant 0 : index
    %2 = vector.load %arg1[%c0_1, %c0_2, %c0_3] : memref<9x16x8xf32, #tpu.memory_space<vmem>>, vector<1x16x8xf32>
    %3 = vector.shape_cast %2 : vector<1x16x8xf32> to vector<16x8xf32>
    %cst = arith.constant dense<0.000000e+00> : vector<16x384xf32>
    %4 = tpu.matmul %3, %1, %cst {dimension_numbers = #tpu.dot_dimension_numbers<[1], [0], [0], [1], [0, 0, 1, 1], [], []>} : vector<16x8xf32>, vector<8x384xf32>, vector<16x384xf32> -> vector<16x384xf32>
    %c18_i32 = arith.constant 18 : i32
    %5 = tpu.dynamic_rotate %0 by %c18_i32 dim 1 : vector<8x384xf32>, i32 -> vector<8x384xf32>
    %c1 = arith.constant 1 : index
    %c0_4 = arith.constant 0 : index
    %c0_5 = arith.constant 0 : index
    %6 = vector.load %arg1[%c1, %c0_4, %c0_5] : memref<9x16x8xf32, #tpu.memory_space<vmem>>, vector<1x16x8xf32>
    %7 = vector.shape_cast %6 : vector<1x16x8xf32> to vector<16x8xf32>
    %cst_6 = arith.constant dense<0.000000e+00> : vector<16x384xf32>
    %8 = tpu.matmul %7, %5, %cst_6 {dimension_numbers = #tpu.dot_dimension_numbers<[1], [0], [0], [1], [0, 0, 1, 1], [], []>} : vector<16x8xf32>, vector<8x384xf32>, vector<16x384xf32> -> vector<16x384xf32>
    %9 = arith.addf %4, %8 : vector<16x384xf32>
    %c17_i32 = arith.constant 17 : i32
    %10 = tpu.dynamic_rotate %0 by %c17_i32 dim 1 : vector<8x384xf32>, i32 -> vector<8x384xf32>
    %c2 = arith.constant 2 : index
    %c0_7 = arith.constant 0 : index
    %c0_8 = arith.constant 0 : index
    %11 = vector.load %arg1[%c2, %c0_7, %c0_8] : memref<9x16x8xf32, #tpu.memory_space<vmem>>, vector<1x16x8xf32>
    %12 = vector.shape_cast %11 : vector<1x16x8xf32> to vector<16x8xf32>
    %cst_9 = arith.constant dense<0.000000e+00> : vector<16x384xf32>
    %13 = tpu.matmul %12, %10, %cst_9 {dimension_numbers = #tpu.dot_dimension_numbers<[1], [0], [0], [1], [0, 0, 1, 1], [], []>} : vector<16x8xf32>, vector<8x384xf32>, vector<16x384xf32> -> vector<16x384xf32>
    %14 = arith.addf %9, %13 : vector<16x384xf32>
    %c1_i32 = arith.constant 1 : i32
    %15 = tpu.dynamic_rotate %0 by %c1_i32 dim 1 : vector<8x384xf32>, i32 -> vector<8x384xf32>
    %c3 = arith.constant 3 : index
    %c0_10 = arith.constant 0 : index
    %c0_11 = arith.constant 0 : index
    %16 = vector.load %arg1[%c3, %c0_10, %c0_11] : memref<9x16x8xf32, #tpu.memory_space<vmem>>, vector<1x16x8xf32>
    %17 = vector.shape_cast %16 : vector<1x16x8xf32> to vector<16x8xf32>
    %cst_12 = arith.constant dense<0.000000e+00> : vector<16x384xf32>
    %18 = tpu.matmul %17, %15, %cst_12 {dimension_numbers = #tpu.dot_dimension_numbers<[1], [0], [0], [1], [0, 0, 1, 1], [], []>} : vector<16x8xf32>, vector<8x384xf32>, vector<16x384xf32> -> vector<16x384xf32>
    %19 = arith.addf %14, %18 : vector<16x384xf32>
    %c4 = arith.constant 4 : index
    %c0_13 = arith.constant 0 : index
    %c0_14 = arith.constant 0 : index
    %20 = vector.load %arg1[%c4, %c0_13, %c0_14] : memref<9x16x8xf32, #tpu.memory_space<vmem>>, vector<1x16x8xf32>
    %21 = vector.shape_cast %20 : vector<1x16x8xf32> to vector<16x8xf32>
    %cst_15 = arith.constant dense<0.000000e+00> : vector<16x384xf32>
    %22 = tpu.matmul %21, %0, %cst_15 {dimension_numbers = #tpu.dot_dimension_numbers<[1], [0], [0], [1], [0, 0, 1, 1], [], []>} : vector<16x8xf32>, vector<8x384xf32>, vector<16x384xf32> -> vector<16x384xf32>
    %23 = arith.addf %19, %22 : vector<16x384xf32>
    %c383_i32 = arith.constant 383 : i32
    %24 = tpu.dynamic_rotate %0 by %c383_i32 dim 1 : vector<8x384xf32>, i32 -> vector<8x384xf32>
    %c5 = arith.constant 5 : index
    %c0_16 = arith.constant 0 : index
    %c0_17 = arith.constant 0 : index
    %25 = vector.load %arg1[%c5, %c0_16, %c0_17] : memref<9x16x8xf32, #tpu.memory_space<vmem>>, vector<1x16x8xf32>
    %26 = vector.shape_cast %25 : vector<1x16x8xf32> to vector<16x8xf32>
    %cst_18 = arith.constant dense<0.000000e+00> : vector<16x384xf32>
    %27 = tpu.matmul %26, %24, %cst_18 {dimension_numbers = #tpu.dot_dimension_numbers<[1], [0], [0], [1], [0, 0, 1, 1], [], []>} : vector<16x8xf32>, vector<8x384xf32>, vector<16x384xf32> -> vector<16x384xf32>
    %28 = arith.addf %23, %27 : vector<16x384xf32>
    %c367_i32 = arith.constant 367 : i32
    %29 = tpu.dynamic_rotate %0 by %c367_i32 dim 1 : vector<8x384xf32>, i32 -> vector<8x384xf32>
    %c6 = arith.constant 6 : index
    %c0_19 = arith.constant 0 : index
    %c0_20 = arith.constant 0 : index
    %30 = vector.load %arg1[%c6, %c0_19, %c0_20] : memref<9x16x8xf32, #tpu.memory_space<vmem>>, vector<1x16x8xf32>
    %31 = vector.shape_cast %30 : vector<1x16x8xf32> to vector<16x8xf32>
    %cst_21 = arith.constant dense<0.000000e+00> : vector<16x384xf32>
    %32 = tpu.matmul %31, %29, %cst_21 {dimension_numbers = #tpu.dot_dimension_numbers<[1], [0], [0], [1], [0, 0, 1, 1], [], []>} : vector<16x8xf32>, vector<8x384xf32>, vector<16x384xf32> -> vector<16x384xf32>
    %33 = arith.addf %28, %32 : vector<16x384xf32>
    %c366_i32 = arith.constant 366 : i32
    %34 = tpu.dynamic_rotate %0 by %c366_i32 dim 1 : vector<8x384xf32>, i32 -> vector<8x384xf32>
    %c7 = arith.constant 7 : index
    %c0_22 = arith.constant 0 : index
    %c0_23 = arith.constant 0 : index
    %35 = vector.load %arg1[%c7, %c0_22, %c0_23] : memref<9x16x8xf32, #tpu.memory_space<vmem>>, vector<1x16x8xf32>
    %36 = vector.shape_cast %35 : vector<1x16x8xf32> to vector<16x8xf32>
    %cst_24 = arith.constant dense<0.000000e+00> : vector<16x384xf32>
    %37 = tpu.matmul %36, %34, %cst_24 {dimension_numbers = #tpu.dot_dimension_numbers<[1], [0], [0], [1], [0, 0, 1, 1], [], []>} : vector<16x8xf32>, vector<8x384xf32>, vector<16x384xf32> -> vector<16x384xf32>
    %38 = arith.addf %33, %37 : vector<16x384xf32>
    %c365_i32 = arith.constant 365 : i32
    %39 = tpu.dynamic_rotate %0 by %c365_i32 dim 1 : vector<8x384xf32>, i32 -> vector<8x384xf32>
    %c8 = arith.constant 8 : index
    %c0_25 = arith.constant 0 : index
    %c0_26 = arith.constant 0 : index
    %40 = vector.load %arg1[%c8, %c0_25, %c0_26] : memref<9x16x8xf32, #tpu.memory_space<vmem>>, vector<1x16x8xf32>
    %41 = vector.shape_cast %40 : vector<1x16x8xf32> to vector<16x8xf32>
    %cst_27 = arith.constant dense<0.000000e+00> : vector<16x384xf32>
    %42 = tpu.matmul %41, %39, %cst_27 {dimension_numbers = #tpu.dot_dimension_numbers<[1], [0], [0], [1], [0, 0, 1, 1], [], []>} : vector<16x8xf32>, vector<8x384xf32>, vector<16x384xf32> -> vector<16x384xf32>
    %43 = arith.addf %38, %42 : vector<16x384xf32>
    %c0_28 = arith.constant 0 : index
    %c0_29 = arith.constant 0 : index
    %44 = vector.load %arg2[%c0_28, %c0_29] : memref<16x3xf32, #tpu.memory_space<vmem>>, vector<16x1xf32>
    %c0_30 = arith.constant 0 : index
    %c1_31 = arith.constant 1 : index
    %45 = vector.load %arg2[%c0_30, %c1_31] : memref<16x3xf32, #tpu.memory_space<vmem>>, vector<16x1xf32>
    %c0_32 = arith.constant 0 : index
    %c2_33 = arith.constant 2 : index
    %46 = vector.load %arg2[%c0_32, %c2_33] : memref<16x3xf32, #tpu.memory_space<vmem>>, vector<16x1xf32>
    %c0_34 = arith.constant 0 : index
    %c0_35 = arith.constant 0 : index
    %47 = vector.load %arg4[%c0_34, %c0_35] : memref<1x384xf32, #tpu.memory_space<vmem>>, vector<1x384xf32>
    %48 = vector.broadcast %44 : vector<16x1xf32> to vector<16x384xf32>
    %49 = arith.addf %43, %48 : vector<16x384xf32>
    %cst_36 = arith.constant 0.000000e+00 : f32
    %50 = vector.broadcast %cst_36 : f32 to vector<16x384xf32>
    %51 = arith.maximumf %49, %50 : vector<16x384xf32>
    %52 = vector.broadcast %47 : vector<1x384xf32> to vector<16x384xf32>
    %53 = arith.mulf %51, %52 : vector<16x384xf32>
    %cst_37 = arith.constant dense<0.000000e+00> : vector<16xf32>
    %54 = vector.multi_reduction <add>, %53, %cst_37 [1] : vector<16x384xf32> to vector<16xf32>
    %55 = vector.shape_cast %54 : vector<16xf32> to vector<16x1xf32>
    %cst_38 = arith.constant 3.906250e-03 : f32
    %56 = vector.broadcast %cst_38 : f32 to vector<16x1xf32>
    %57 = arith.mulf %55, %56 : vector<16x1xf32>
    %58 = arith.mulf %53, %53 : vector<16x384xf32>
    %cst_39 = arith.constant dense<0.000000e+00> : vector<16xf32>
    %59 = vector.multi_reduction <add>, %58, %cst_39 [1] : vector<16x384xf32> to vector<16xf32>
    %60 = vector.shape_cast %59 : vector<16xf32> to vector<16x1xf32>
    %cst_40 = arith.constant 3.906250e-03 : f32
    %61 = vector.broadcast %cst_40 : f32 to vector<16x1xf32>
    %62 = arith.mulf %60, %61 : vector<16x1xf32>
    %63 = arith.mulf %57, %57 : vector<16x1xf32>
    %64 = arith.subf %62, %63 : vector<16x1xf32>
    %cst_41 = arith.constant 0.000000e+00 : f32
    %65 = vector.broadcast %cst_41 : f32 to vector<16x1xf32>
    %66 = arith.maximumf %64, %65 : vector<16x1xf32>
    %67 = vector.broadcast %57 : vector<16x1xf32> to vector<16x384xf32>
    %68 = arith.subf %53, %67 : vector<16x384xf32>
    %69 = vector.broadcast %45 : vector<16x1xf32> to vector<16x384xf32>
    %70 = arith.mulf %69, %68 : vector<16x384xf32>
    %cst_42 = arith.constant 9.99999974E-6 : f32
    %71 = vector.broadcast %cst_42 : f32 to vector<16x1xf32>
    %72 = arith.addf %66, %71 : vector<16x1xf32>
    %73 = math.rsqrt %72 : vector<16x1xf32>
    %74 = vector.broadcast %73 : vector<16x1xf32> to vector<16x384xf32>
    %75 = arith.mulf %70, %74 : vector<16x384xf32>
    %76 = vector.broadcast %46 : vector<16x1xf32> to vector<16x384xf32>
    %77 = arith.addf %75, %76 : vector<16x384xf32>
    %78 = vector.extract_strided_slice %77 {offsets = [0, 0], sizes = [8, 384], strides = [1, 1]} : vector<16x384xf32> to vector<8x384xf32>
    %79 = vector.extract_strided_slice %77 {offsets = [8, 0], sizes = [8, 384], strides = [1, 1]} : vector<16x384xf32> to vector<8x384xf32>
    %80 = arith.addf %78, %79 : vector<8x384xf32>
    %cst_43 = arith.constant 0.000000e+00 : f32
    %81 = vector.broadcast %cst_43 : f32 to vector<8x384xf32>
    %82 = arith.maximumf %80, %81 : vector<8x384xf32>
    %c0_44 = arith.constant 0 : index
    %c0_45 = arith.constant 0 : index
    %83 = vector.load %arg3[%c0_44, %c0_45] : memref<1x9xf32, #tpu.memory_space<vmem>>, vector<1x8xf32>
    %c0_46 = arith.constant 0 : index
    %c8_47 = arith.constant 8 : index
    %84 = vector.load %arg3[%c0_46, %c8_47] : memref<1x9xf32, #tpu.memory_space<vmem>>, vector<1x1xf32>
    %cst_48 = arith.constant dense<0.000000e+00> : vector<1x384xf32>
    %85 = tpu.matmul %83, %82, %cst_48 {dimension_numbers = #tpu.dot_dimension_numbers<[1], [0], [0], [1], [0, 0, 1, 1], [], []>} : vector<1x8xf32>, vector<8x384xf32>, vector<1x384xf32> -> vector<1x384xf32>
    %86 = vector.broadcast %84 : vector<1x1xf32> to vector<1x384xf32>
    %87 = arith.addf %85, %86 : vector<1x384xf32>
    %c0_49 = arith.constant 0 : index
    %c0_50 = arith.constant 0 : index
    %88 = vector.load %arg5[%c0_49, %c0_50] : memref<1x384xf32, #tpu.memory_space<vmem>>, vector<1x384xf32>
    tpu.vector_store %arg5[%c0_49, %c0_50], %87 {strides = array<i32>} : memref<1x384xf32, #tpu.memory_space<vmem>>, vector<1x384xf32>,
    return
  }
}

</mosaic_0001>

<llo_original>
// kernel: squeeze.5
$region0: #{squeeze.5}
  %s0 = inlined_call_operand.vmem [shape: f32[324], index: 0, kind: input, shape index: {}]
  %s1 = inlined_call_operand.vmem [shape: f32[18,18], index: 1, kind: output, shape index: {}]
  $region1: #{squeeze.5} parent=0
    #allocation0 [shape = 'u8[4096]{0}', space=vmem, size = 0x1000, scoped, tag = 'scoped mem for input reshape']
    %s3 = sshll.u32 1, 4
    %s4 = ssub.s32 %s3, 1
    %v5 = vld [vmem:[%s0] sm:%s4]
    %6 = vst [vmem:[#allocation0] sm:%s4] %v5
    %v7 = vld [vmem:[#allocation0] sm:$0x1]
    %vm8 = vcmask 146432
    %9 = vst.msk [vmem:[%s1] sm:$0x1] %vm8, %v7
    %s10 = scalar_lea.vmem [#allocation0], 2
    %v11 = vld [vmem:[%s10] sm:$0x1]
    %12 = vrot.lane.b32.xlu0 %v11, 114
    %v13 = vpop.permute.xlu0 %12
    %vm14 = vcmask 146432
    %s15 = scalar_lea.vmem %s1, 15
    %16 = vst.msk [vmem:[%s15] sm:$0x1] %vm14, %v13
    %s17 = scalar_lea.vmem [#allocation0], 1
    %v18 = vld [vmem:[%s17] sm:$0x1]
    %19 = vrot.lane.b32.xlu0 %v18, 112
    %v20 = vpop.permute.xlu0 %19
    %vm21 = vcmask 146432
    %s22 = scalar_lea.vmem %s1, 8
    %23 = vst.msk [vmem:[%s22] sm:$0x1] %vm21, %v20
    %v24 = vld [vmem:[#allocation0] sm:$0x1]
    %25 = vrot.lane.b32.xlu0 %v24, 110
    %v26 = vpop.permute.xlu0 %25
    %vm27 = vcmask 146432
    %s28 = scalar_lea.vmem %s1, 1
    %29 = vst.msk [vmem:[%s28] sm:$0x1] %vm27, %v26
    %s30 = scalar_lea.vmem [#allocation0], 2
    %v31 = vld [vmem:[%s30] sm:$0x1]
    %32 = vrot.lane.b32.xlu0 %v31, 96
    %v33 = vpop.permute.xlu0 %32
    %vm34 = vcmask 146432
    %s35 = scalar_lea.vmem %s1, 16
    %36 = vst.msk [vmem:[%s35] sm:$0x1] %vm34, %v33
    %s37 = scalar_lea.vmem [#allocation0], 1
    %v38 = vld [vmem:[%s37] sm:$0x1]
    %39 = vrot.lane.b32.xlu0 %v38, 94
    %v40 = vpop.permute.xlu0 %39
    %vm41 = vcmask 146432
    %s42 = scalar_lea.vmem %s1, 9
    %43 = vst.msk [vmem:[%s42] sm:$0x1] %vm41, %v40
    %v44 = vld [vmem:[#allocation0] sm:$0x1]
    %45 = vrot.lane.b32.xlu0 %v44, 92
    %v46 = vpop.permute.xlu0 %45
    %vm47 = vcmask 146432
    %s48 = scalar_lea.vmem %s1, 2
    %49 = vst.msk [vmem:[%s48] sm:$0x1] %vm47, %v46
    %s50 = scalar_lea.vmem [#allocation0], 2
    %v51 = vld [vmem:[%s50] sm:$0x1]
    %52 = vrot.lane.b32.xlu0 %v51, 78
    %v53 = vpop.permute.xlu0 %52
    %vm54 = vcmask 146432
    %s55 = scalar_lea.vmem %s1, 17
    %56 = vst.msk [vmem:[%s55] sm:$0x1] %vm54, %v53
    %s57 = scalar_lea.vmem [#allocation0], 1
    %v58 = vld [vmem:[%s57] sm:$0x1]
    %59 = vrot.lane.b32.xlu0 %v58, 76
    %v60 = vpop.permute.xlu0 %59
    %vm61 = vcmask 146432
    %s62 = scalar_lea.vmem %s1, 10
    %63 = vst.msk [vmem:[%s62] sm:$0x1] %vm61, %v60
    %v64 = vld [vmem:[#allocation0] sm:$0x1]
    %65 = vrot.lane.b32.xlu0 %v64, 74
    %v66 = vpop.permute.xlu0 %65
    %vm67 = vcmask 146432
    %s68 = scalar_lea.vmem %s1, 3
    %69 = vst.msk [vmem:[%s68] sm:$0x1] %vm67, %v66
    %s70 = scalar_lea.vmem [#allocation0], 1
    %v71 = vld [vmem:[%s70] sm:$0x1]
    %72 = vrot.lane.b32.xlu0 %v71, 58
    %v73 = vpop.permute.xlu0 %72
    %vm74 = vcmask 146432
    %s75 = scalar_lea.vmem %s1, 11
    %76 = vst.msk [vmem:[%s75] sm:$0x1] %vm74, %v73
    %v77 = vld [vmem:[#allocation0] sm:$0x1]
    %78 = vrot.lane.b32.xlu0 %v77, 56
    %v79 = vpop.permute.xlu0 %78
    %vm80 = vcmask 146432
    %s81 = scalar_lea.vmem %s1, 4
    %82 = vst.msk [vmem:[%s81] sm:$0x1] %vm80, %v79
    %s83 = scalar_lea.vmem [#allocation0], 1
    %v84 = vld [vmem:[%s83] sm:$0x1]
    %85 = vrot.lane.b32.xlu0 %v84, 40
    %v86 = vpop.permute.xlu0 %85
    %vm87 = vcmask 146432
    %s88 = scalar_lea.vmem %s1, 12
    %89 = vst.msk [vmem:[%s88] sm:$0x1] %vm87, %v86
    %v90 = vld [vmem:[#allocation0] sm:$0x1]
    %91 = vrot.lane.b32.xlu0 %v90, 38
    %v92 = vpop.permute.xlu0 %91
    %vm93 = vcmask 146432
    %s94 = scalar_lea.vmem %s1, 5
    %95 = vst.msk [vmem:[%s94] sm:$0x1] %vm93, %v92
    %s96 = scalar_lea.vmem [#allocation0], 1
    %v97 = vld [vmem:[%s96] sm:$0x1]
    %98 = vrot.lane.b32.xlu0 %v97, 22
    %v99 = vpop.permute.xlu0 %98
    %vm100 = vcmask 146432
    %s101 = scalar_lea.vmem %s1, 13
    %102 = vst.msk [vmem:[%s101] sm:$0x1] %vm100, %v99
    %v103 = vld [vmem:[#allocation0] sm:$0x1]
    %104 = vrot.lane.b32.xlu0 %v103, 20
    %v105 = vpop.permute.xlu0 %104
    %vm106 = vcmask 146432
    %s107 = scalar_lea.vmem %s1, 6
    %108 = vst.msk [vmem:[%s107] sm:$0x1] %vm106, %v105
    %s109 = scalar_lea.vmem [#allocation0], 1
    %v110 = vld [vmem:[%s109] sm:$0x1]
    %s111 = scalar_lea.vmem [#allocation0], 2
    %v112 = vld [vmem:[%s111] sm:$0x1]
    %vm113 = vcmask 1014784
    %v114 = vsel %vm113, %v112, %v110
    %115 = vrot.lane.b32.xlu0 %v114, 4
    %v116 = vpop.permute.xlu0 %115
    %vm117 = vcmask 31744
    %s118 = scalar_lea.vmem %s1, 14
    %119 = vst.msk [vmem:[%s118] sm:$0x1] %vm117, %v116
    %vm120 = vcmask 146464
    %s121 = scalar_lea.vmem %s1, 14
    %122 = vst.msk [vmem:[%s121] sm:$0x1] %vm120, %v116
    %v123 = vld [vmem:[#allocation0] sm:$0x1]
    %s124 = scalar_lea.vmem [#allocation0], 1
    %v125 = vld [vmem:[%s124] sm:$0x1]
    %vm126 = vcmask 1031168
    %v127 = vsel %vm126, %v125, %v123
    %128 = vrot.lane.b32.xlu0 %v127, 2
    %v129 = vpop.permute.xlu0 %128
    %vm130 = vcmask 15360
    %s131 = scalar_lea.vmem %s1, 7
    %132 = vst.msk [vmem:[%s131] sm:$0x1] %vm130, %v129
    %vm133 = vcmask 146448
    %s134 = scalar_lea.vmem %s1, 7
    %135 = vst.msk [vmem:[%s134] sm:$0x1] %vm133, %v129

// kernel: model_forward.1
$region0: #{model_forward.1}
  #allocation0 [shape = 'u32[]', space=smem, size = 0x4, offset = 0x4, fixed_abs, tag = 'smem constant byte address 0x4 - core index']
  #allocation1 [shape = 'u32[144,128]{1,0:T(1,128)}', space=vmem, size = 0x12000, scoped, tag = 'internal scratch']
  %s0 = inlined_call_operand.vmem [shape: f32[8,384], index: 0, kind: input, shape index: {}]
  %s1 = inlined_call_operand.vmem [shape: f32[9,16,8], index: 1, kind: input, shape index: {}]
  %s2 = inlined_call_operand.vmem [shape: f32[16,3], index: 2, kind: input, shape index: {}]
  %s3 = inlined_call_operand.vmem [shape: f32[1,9], index: 3, kind: input, shape index: {}]
  %s4 = inlined_call_operand.vmem [shape: f32[1,384], index: 4, kind: input, shape index: {}]
  %s5 = inlined_call_operand.vmem [shape: f32[1,384], index: 5, kind: output, shape index: {}]
  %s6 = sld [smem:[#allocation0]]
  $region30: #{model_forward.1} parent=0
    _
  %s8 = ssub.s32 1, %s6
  %s9 = scalar_select 0, %s8, %s6
  // Predicated region
  $region2: #{model_forward.1} parent=0 // pred_check
    _
  $region3: #{model_forward.1} parent=0 // pred_check_branch
    %11 = sbr.rel (0) target = $region5
  $region4: #{model_forward.1} parent=0 // pred_region
    _
  $region5: #{model_forward.1} parent=0 // pred_fallthru
    _
  // Predicated region
  $region6: #{model_forward.1} parent=0 // pred_check
    _
  $region7: #{model_forward.1} parent=0 // pred_check_branch
    %13 = sbr.rel (0) target = $region9
  $region8: #{model_forward.1} parent=0 // pred_region
    _
  $region9: #{model_forward.1} parent=0 // pred_fallthru
    _
  // Predicated region
  $region10: #{model_forward.1} parent=0 // pred_check
    _
  $region11: #{model_forward.1} parent=0 // pred_check_branch
    %15 = sbr.rel (0) target = $region13
  $region12: #{model_forward.1} parent=0 // pred_region
    _
  $region13: #{model_forward.1} parent=0 // pred_fallthru
    _
  // Predicated region
  $region14: #{model_forward.1} parent=0 // pred_check
    _
  $region15: #{model_forward.1} parent=0 // pred_check_branch
    %17 = sbr.rel (0) target = $region17
  $region16: #{model_forward.1} parent=0 // pred_region
    _
  $region17: #{model_forward.1} parent=0 // pred_fallthru
    _
  // Predicated region
  $region18: #{model_forward.1} parent=0 // pred_check
    _
  $region19: #{model_forward.1} parent=0 // pred_check_branch
    %19 = sbr.rel (0) target = $region21
  $region20: #{model_forward.1} parent=0 // pred_region
    _
  $region21: #{model_forward.1} parent=0 // pred_fallthru
    _
  %v20 = vld [vmem:[%s0] sm:$0xff]
  %v21 = vld [vmem:[%s0 + $0x8] sm:$0xff]
  %v22 = vld [vmem:[%s0 + $0x10] sm:$0xff]
  %23 = vrot.lane.b32.xlu0 %v20, 19
  %v24 = vpop.permute.xlu0 %23
  %25 = vrot.lane.b32.xlu0 %v21, 19
  %v26 = vpop.permute.xlu0 %25
  %27 = vrot.lane.b32.xlu0 %v22, 19
  %v28 = vpop.permute.xlu0 %27
  %v29 = vlaneseq
  %v30 = vand.u32 %v29, 127
  %vm31 = vcmp.lt.s32.totalorder %v30, 19
  %v32 = vsel %vm31, %v26, %v28
  %v33 = vsel %vm31, %v24, %v26
  %v34 = vsel %vm31, %v28, %v24
  %v35 = vld [vmem:[%s1] sm:$0xff]
  %v36 = vld [vmem:[%s1 + $0x8] sm:$0xff]
  %37 = vrot.lane.b32.xlu0 %v20, 18
  %v38 = vpop.permute.xlu0 %37
  %39 = vrot.lane.b32.xlu0 %v21, 18
  %v40 = vpop.permute.xlu0 %39
  %41 = vrot.lane.b32.xlu0 %v22, 18
  %v42 = vpop.permute.xlu0 %41
  %vm43 = vcmp.lt.s32.totalorder %v30, 18
  %v44 = vsel %vm43, %v40, %v42
  %v45 = vsel %vm43, %v38, %v40
  %v46 = vsel %vm43, %v42, %v38
  %s47 = scalar_lea.vmem %s1, 16
  %v48 = vld [vmem:[%s47] sm:$0xff]
  %v49 = vld [vmem:[%s47 + $0x8] sm:$0xff]
  %vm50 = vcmask 64512
  %v52 = vsel %vm50, %v48, 0
  %v55 = vsel %vm50, %v49, 0
  %57 = vmatprep.subr.mxu0 0.0
  %58 = vmatpush1.msra.mxu0 0.0
  %59 = vmatprep.subr.mxu0 0.0
  %60 = vmatpush1.msra.mxu0 0.0
  %61 = vmatprep.subr.mxu0 0.0
  %62 = vmatpush1.msra.mxu0 0.0
  %63 = vmatprep.subr.mxu0 0.0
  %64 = vmatpush1.msra.mxu0 0.0
  %65 = vmatprep.subr.mxu0 0.0
  %66 = vmatpush1.msra.mxu0 0.0
  %67 = vmatprep.subr.mxu0 0.0
  %68 = vmatpush1.msra.mxu0 0.0
  %69 = vmatprep.subr.mxu0 0.0
  %70 = vmatpush1.msra.mxu0 0.0
  %71 = vmatprep.subr.mxu0 0.0
  %72 = vmatpush1.msra.mxu0 0.0
  %73 = vmatprep.subr.mxu0 0.0
  %74 = vmatpush1.msra.mxu0 0.0
  %75 = vmatprep.subr.mxu0 0.0
  %76 = vmatpush1.msra.mxu0 0.0
  %77 = vmatprep.subr.mxu0 0.0
  %78 = vmatpush1.msra.mxu0 0.0
  %79 = vmatprep.subr.mxu0 0.0
  %80 = vmatpush1.msra.mxu0 0.0
  %81 = vmatprep.subr.mxu0 0.0
  %82 = vmatpush1.msra.mxu0 0.0
  %83 = vmatprep.subr.mxu0 0.0
  %84 = vmatpush1.msra.mxu0 0.0
  %85 = vmatprep.subr.mxu0 0.0
  %86 = vmatpush1.msra.mxu0 0.0
  %87 = vmatprep.subr.mxu0 %v45
  %88 = vmatpush1.msra.mxu0 %v46
  %89 = vmatprep.subr.mxu0 0.0
  %90 = vmatpush2.msra.mxu0 0.0
  %91 = vmatprep.subr.mxu0 0.0
  %92 = vmatpush2.msra.mxu0 0.0
  %93 = vmatprep.subr.mxu0 0.0
  %94 = vmatpush2.msra.mxu0 0.0
  %95 = vmatprep.subr.mxu0 0.0
  %96 = vmatpush2.msra.mxu0 0.0
  %97 = vmatprep.subr.mxu0 0.0
  %98 = vmatpush2.msra.mxu0 0.0
  %99 = vmatprep.subr.mxu0 0.0
  %100 = vmatpush2.msra.mxu0 0.0
  %101 = vmatprep.subr.mxu0 0.0
  %102 = vmatpush2.msra.mxu0 0.0
  %103 = vmatprep.subr.mxu0 0.0
  %104 = vmatpush2.msra.mxu0 0.0
  %105 = vmatprep.subr.mxu0 0.0
  %106 = vmatpush2.msra.mxu0 0.0
  %107 = vmatprep.subr.mxu0 0.0
  %108 = vmatpush2.msra.mxu0 0.0
  %109 = vmatprep.subr.mxu0 0.0
  %110 = vmatpush2.msra.mxu0 0.0
  %111 = vmatprep.subr.mxu0 0.0
  %112 = vmatpush2.msra.mxu0 0.0
  %113 = vmatprep.subr.mxu0 0.0
  %114 = vmatpush2.msra.mxu0 0.0
  %115 = vmatprep.subr.mxu0 0.0
  %116 = vmatpush2.msra.mxu0 0.0
  %117 = vmatprep.subr.mxu0 0.0
  %118 = vmatpush2.msra.mxu0 0.0
  %119 = vmatprep.subr.mxu0 0.0
  %120 = vmatpush2.msra.mxu0 0.0
  %121 = vmatprep.mubr.f32.mxu0 0.0
  %122 = vmatmul.mubr.f32.gmra.mxu0 %v52
  %v123 = vpop.f32.mrf.mxu0
  %v124 = vadd.f32 0.0, %v123
  %v125 = vpop.f32.mrf.mxu0
  %v126 = vadd.f32 0.0, %v125
  %127 = vmatprep.mubr.f32.mxu0 0.0
  %128 = vmatmul.mubr.f32.gmra.mxu0 %v55
  %v129 = vpop.f32.mrf.mxu0
  %v130 = vadd.f32 0.0, %v129
  %v131 = vpop.f32.mrf.mxu0
  %v132 = vadd.f32 0.0, %v131
  %133 = vdwg.mxu0
  %134 = vmatprep.subr.mxu0 0.0
  %135 = vmatpush1.msra.mxu0 0.0
  %136 = vmatprep.subr.mxu0 0.0
  %137 = vmatpush1.msra.mxu0 0.0
  %138 = vmatprep.subr.mxu0 0.0
  %139 = vmatpush1.msra.mxu0 0.0
  %140 = vmatprep.subr.mxu0 0.0
  %141 = vmatpush1.msra.mxu0 0.0
  %142 = vmatprep.subr.mxu0 0.0
  %143 = vmatpush1.msra.mxu0 0.0
  %144 = vmatprep.subr.mxu0 0.0
  %145 = vmatpush1.msra.mxu0 0.0
  %146 = vmatprep.subr.mxu0 0.0
  %147 = vmatpush1.msra.mxu0 0.0
  %148 = vmatprep.subr.mxu0 0.0
  %149 = vmatpush1.msra.mxu0 0.0
  %150 = vmatprep.subr.mxu0 0.0
  %151 = vmatpush1.msra.mxu0 0.0
  %152 = vmatprep.subr.mxu0 0.0
  %153 = vmatpush1.msra.mxu0 0.0
  %154 = vmatprep.subr.mxu0 0.0
  %155 = vmatpush1.msra.mxu0 0.0
  %156 = vmatprep.subr.mxu0 0.0
  %157 = vmatpush1.msra.mxu0 0.0
  %158 = vmatprep.subr.mxu0 0.0
  %159 = vmatpush1.msra.mxu0 0.0
  %160 = vmatprep.subr.mxu0 0.0
  %161 = vmatpush1.msra.mxu0 0.0
  %162 = vmatprep.subr.mxu0 0.0
  %163 = vmatpush1.msra.mxu0 0.0
  %164 = vmatprep.subr.mxu0 0.0
  %165 = vmatpush1.msra.mxu0 %v44
  %166 = vmatprep.subr.mxu0 0.0
  %167 = vmatpush2.msra.mxu0 0.0
  %168 = vmatprep.subr.mxu0 0.0
  %169 = vmatpush2.msra.mxu0 0.0
  %170 = vmatprep.subr.mxu0 0.0
  %171 = vmatpush2.msra.mxu0 0.0
  %172 = vmatprep.subr.mxu0 0.0
  %173 = vmatpush2.msra.mxu0 0.0
  %174 = vmatprep.subr.mxu0 0.0
  %175 = vmatpush2.msra.mxu0 0.0
  %176 = vmatprep.subr.mxu0 0.0
  %177 = vmatpush2.msra.mxu0 0.0
  %178 = vmatprep.subr.mxu0 0.0
  %179 = vmatpush2.msra.mxu0 0.0
  %180 = vmatprep.subr.mxu0 0.0
  %181 = vmatpush2.msra.mxu0 0.0
  %182 = vmatprep.subr.mxu0 0.0
  %183 = vmatpush2.msra.mxu0 0.0
  %184 = vmatprep.subr.mxu0 0.0
  %185 = vmatpush2.msra.mxu0 0.0
  %186 = vmatprep.subr.mxu0 0.0
  %187 = vmatpush2.msra.mxu0 0.0
  %188 = vmatprep.subr.mxu0 0.0
  %189 = vmatpush2.msra.mxu0 0.0
  %190 = vmatprep.subr.mxu0 0.0
  %191 = vmatpush2.msra.mxu0 0.0
  %192 = vmatprep.subr.mxu0 0.0
  %193 = vmatpush2.msra.mxu0 0.0
  %194 = vmatprep.subr.mxu0 0.0
  %195 = vmatpush2.msra.mxu0 0.0
  %196 = vmatprep.subr.mxu0 0.0
  %197 = vmatpush2.msra.mxu0 0.0
  %198 = vmatprep.mubr.f32.mxu0 0.0
  %199 = vmatmul.mubr.f32.gmra.mxu0 %v52
  %v200 = vpop.f32.mrf.mxu0
  %v201 = vadd.f32 0.0, %v200
  %v202 = vpop.f32.mrf.mxu0
  %203 = vmatprep.mubr.f32.mxu0 0.0
  %204 = vmatmul.mubr.f32.gmra.mxu0 %v55
  %v205 = vpop.f32.mrf.mxu0
  %v206 = vadd.f32 0.0, %v205
  %v207 = vpop.f32.mrf.mxu0
  %208 = vdwg.mxu0
  %v210 = vsel %vm50, %v35, 0
  %v213 = vsel %vm50, %v36, 0
  %215 = vmatprep.subr.mxu0 0.0
  %216 = vmatpush1.msra.mxu0 0.0
  %217 = vmatprep.subr.mxu0 0.0
  %218 = vmatpush1.msra.mxu0 0.0
  %219 = vmatprep.subr.mxu0 0.0
  %220 = vmatpush1.msra.mxu0 0.0
  %221 = vmatprep.subr.mxu0 0.0
  %222 = vmatpush1.msra.mxu0 0.0
  %223 = vmatprep.subr.mxu0 0.0
  %224 = vmatpush1.msra.mxu0 0.0
  %225 = vmatprep.subr.mxu0 0.0
  %226 = vmatpush1.msra.mxu0 0.0
  %227 = vmatprep.subr.mxu0 0.0
  %228 = vmatpush1.msra.mxu0 0.0
  %229 = vmatprep.subr.mxu0 0.0
  %230 = vmatpush1.msra.mxu0 0.0
  %231 = vmatprep.subr.mxu0 0.0
  %232 = vmatpush1.msra.mxu0 0.0
  %233 = vmatprep.subr.mxu0 0.0
  %234 = vmatpush1.msra.mxu0 0.0
  %235 = vmatprep.subr.mxu0 0.0
  %236 = vmatpush1.msra.mxu0 0.0
  %237 = vmatprep.subr.mxu0 0.0
  %238 = vmatpush1.msra.mxu0 0.0
  %239 = vmatprep.subr.mxu0 0.0
  %240 = vmatpush1.msra.mxu0 0.0
  %241 = vmatprep.subr.mxu0 0.0
  %242 = vmatpush1.msra.mxu0 0.0
  %243 = vmatprep.subr.mxu0 0.0
  %244 = vmatpush1.msra.mxu0 0.0
  %245 = vmatprep.subr.mxu0 %v33
  %246 = vmatpush1.msra.mxu0 %v34
  %247 = vmatprep.subr.mxu0 0.0
  %248 = vmatpush2.msra.mxu0 0.0
  %249 = vmatprep.subr.mxu0 0.0
  %250 = vmatpush2.msra.mxu0 0.0
  %251 = vmatprep.subr.mxu0 0.0
  %252 = vmatpush2.msra.mxu0 0.0
  %253 = vmatprep.subr.mxu0 0.0
  %254 = vmatpush2.msra.mxu0 0.0
  %255 = vmatprep.subr.mxu0 0.0
  %256 = vmatpush2.msra.mxu0 0.0
  %257 = vmatprep.subr.mxu0 0.0
  %258 = vmatpush2.msra.mxu0 0.0
  %259 = vmatprep.subr.mxu0 0.0
  %260 = vmatpush2.msra.mxu0 0.0
  %261 = vmatprep.subr.mxu0 0.0
  %262 = vmatpush2.msra.mxu0 0.0
  %263 = vmatprep.subr.mxu0 0.0
  %264 = vmatpush2.msra.mxu0 0.0
  %265 = vmatprep.subr.mxu0 0.0
  %266 = vmatpush2.msra.mxu0 0.0
  %267 = vmatprep.subr.mxu0 0.0
  %268 = vmatpush2.msra.mxu0 0.0
  %269 = vmatprep.subr.mxu0 0.0
  %270 = vmatpush2.msra.mxu0 0.0
  %271 = vmatprep.subr.mxu0 0.0
  %272 = vmatpush2.msra.mxu0 0.0
  %273 = vmatprep.subr.mxu0 0.0
  %274 = vmatpush2.msra.mxu0 0.0
  %275 = vmatprep.subr.mxu0 0.0
  %276 = vmatpush2.msra.mxu0 0.0
  %277 = vmatprep.subr.mxu0 0.0
  %278 = vmatpush2.msra.mxu0 0.0
  %279 = vmatprep.mubr.f32.mxu0 0.0
  %280 = vmatmul.mubr.f32.gmra.mxu0 %v210
  %v281 = vpop.f32.mrf.mxu0
  %v282 = vadd.f32 %v124, %v281
  %v283 = vpop.f32.mrf.mxu0
  %v284 = vadd.f32 %v126, %v283
  %285 = vmatprep.mubr.f32.mxu0 0.0
  %286 = vmatmul.mubr.f32.gmra.mxu0 %v213
  %v287 = vpop.f32.mrf.mxu0
  %v288 = vadd.f32 %v130, %v287
  %v289 = vpop.f32.mrf.mxu0
  %v290 = vadd.f32 %v132, %v289
  %291 = vdwg.mxu0
  %292 = vmatprep.subr.mxu0 0.0
  %293 = vmatpush1.msra.mxu0 0.0
  %294 = vmatprep.subr.mxu0 0.0
  %295 = vmatpush1.msra.mxu0 0.0
  %296 = vmatprep.subr.mxu0 0.0
  %297 = vmatpush1.msra.mxu0 0.0
  %298 = vmatprep.subr.mxu0 0.0
  %299 = vmatpush1.msra.mxu0 0.0
  %300 = vmatprep.subr.mxu0 0.0
  %301 = vmatpush1.msra.mxu0 0.0
  %302 = vmatprep.subr.mxu0 0.0
  %303 = vmatpush1.msra.mxu0 0.0
  %304 = vmatprep.subr.mxu0 0.0
  %305 = vmatpush1.msra.mxu0 0.0
  %306 = vmatprep.subr.mxu0 0.0
  %307 = vmatpush1.msra.mxu0 0.0
  %308 = vmatprep.subr.mxu0 0.0
  %309 = vmatpush1.msra.mxu0 0.0
  %310 = vmatprep.subr.mxu0 0.0
  %311 = vmatpush1.msra.mxu0 0.0
  %312 = vmatprep.subr.mxu0 0.0
  %313 = vmatpush1.msra.mxu0 0.0
  %314 = vmatprep.subr.mxu0 0.0
  %315 = vmatpush1.msra.mxu0 0.0
  %316 = vmatprep.subr.mxu0 0.0
  %317 = vmatpush1.msra.mxu0 0.0
  %318 = vmatprep.subr.mxu0 0.0
  %319 = vmatpush1.msra.mxu0 0.0
  %320 = vmatprep.subr.mxu0 0.0
  %321 = vmatpush1.msra.mxu0 0.0
  %322 = vmatprep.subr.mxu0 0.0
  %323 = vmatpush1.msra.mxu0 %v32
  %324 = vmatprep.subr.mxu0 0.0
  %325 = vmatpush2.msra.mxu0 0.0
  %326 = vmatprep.subr.mxu0 0.0
  %327 = vmatpush2.msra.mxu0 0.0
  %328 = vmatprep.subr.mxu0 0.0
  %329 = vmatpush2.msra.mxu0 0.0
  %330 = vmatprep.subr.mxu0 0.0
  %331 = vmatpush2.msra.mxu0 0.0
  %332 = vmatprep.subr.mxu0 0.0
  %333 = vmatpush2.msra.mxu0 0.0
  %334 = vmatprep.subr.mxu0 0.0
  %335 = vmatpush2.msra.mxu0 0.0
  %336 = vmatprep.subr.mxu0 0.0
  %337 = vmatpush2.msra.mxu0 0.0
  %338 = vmatprep.subr.mxu0 0.0
  %339 = vmatpush2.msra.mxu0 0.0
  %340 = vmatprep.subr.mxu0 0.0
  %341 = vmatpush2.msra.mxu0 0.0
  %342 = vmatprep.subr.mxu0 0.0
  %343 = vmatpush2.msra.mxu0 0.0
  %344 = vmatprep.subr.mxu0 0.0
  %345 = vmatpush2.msra.mxu0 0.0
  %346 = vmatprep.subr.mxu0 0.0
  %347 = vmatpush2.msra.mxu0 0.0
  %348 = vmatprep.subr.mxu0 0.0
  %349 = vmatpush2.msra.mxu0 0.0
  %350 = vmatprep.subr.mxu0 0.0
  %351 = vmatpush2.msra.mxu0 0.0
  %352 = vmatprep.subr.mxu0 0.0
  %353 = vmatpush2.msra.mxu0 0.0
  %354 = vmatprep.subr.mxu0 0.0
  %355 = vmatpush2.msra.mxu0 0.0
  %356 = vmatprep.mubr.f32.mxu0 0.0
  %357 = vmatmul.mubr.f32.gmra.mxu0 %v210
  %v358 = vpop.f32.mrf.mxu0
  %v359 = vadd.f32 %v201, %v358
  %v360 = vpop.f32.mrf.mxu0
  %361 = vmatprep.mubr.f32.mxu0 0.0
  %362 = vmatmul.mubr.f32.gmra.mxu0 %v213
  %v363 = vpop.f32.mrf.mxu0
  %v364 = vadd.f32 %v206, %v363
  %v365 = vpop.f32.mrf.mxu0
  %366 = vdwg.mxu0
  %367 = vrot.lane.b32.xlu0 %v20, 17
  %v368 = vpop.permute.xlu0 %367
  %369 = vrot.lane.b32.xlu0 %v21, 17
  %v370 = vpop.permute.xlu0 %369
  %371 = vrot.lane.b32.xlu0 %v22, 17
  %v372 = vpop.permute.xlu0 %371
  %vm373 = vcmp.lt.s32.totalorder %v30, 17
  %v374 = vsel %vm373, %v370, %v372
  %v375 = vsel %vm373, %v368, %v370
  %v376 = vsel %vm373, %v372, %v368
  %s377 = scalar_lea.vmem %s1, 32
  %v378 = vld [vmem:[%s377] sm:$0xff]
  %v379 = vld [vmem:[%s377 + $0x8] sm:$0xff]
  %v381 = vsel %vm50, %v378, 0
  %v384 = vsel %vm50, %v379, 0
  %386 = vmatprep.subr.mxu0 0.0
  %387 = vmatpush1.msra.mxu0 0.0
  %388 = vmatprep.subr.mxu0 0.0
  %389 = vmatpush1.msra.mxu0 0.0
  %390 = vmatprep.subr.mxu0 0.0
  %391 = vmatpush1.msra.mxu0 0.0
  %392 = vmatprep.subr.mxu0 0.0
  %393 = vmatpush1.msra.mxu0 0.0
  %394 = vmatprep.subr.mxu0 0.0
  %395 = vmatpush1.msra.mxu0 0.0
  %396 = vmatprep.subr.mxu0 0.0
  %397 = vmatpush1.msra.mxu0 0.0
  %398 = vmatprep.subr.mxu0 0.0
  %399 = vmatpush1.msra.mxu0 0.0
  %400 = vmatprep.subr.mxu0 0.0
  %401 = vmatpush1.msra.mxu0 0.0
  %402 = vmatprep.subr.mxu0 0.0
  %403 = vmatpush1.msra.mxu0 0.0
  %404 = vmatprep.subr.mxu0 0.0
  %405 = vmatpush1.msra.mxu0 0.0
  %406 = vmatprep.subr.mxu0 0.0
  %407 = vmatpush1.msra.mxu0 0.0
  %408 = vmatprep.subr.mxu0 0.0
  %409 = vmatpush1.msra.mxu0 0.0
  %410 = vmatprep.subr.mxu0 0.0
  %411 = vmatpush1.msra.mxu0 0.0
  %412 = vmatprep.subr.mxu0 0.0
  %413 = vmatpush1.msra.mxu0 0.0
  %414 = vmatprep.subr.mxu0 0.0
  %415 = vmatpush1.msra.mxu0 0.0
  %416 = vmatprep.subr.mxu0 %v375
  %417 = vmatpush1.msra.mxu0 %v376
  %418 = vmatprep.subr.mxu0 0.0
  %419 = vmatpush2.msra.mxu0 0.0
  %420 = vmatprep.subr.mxu0 0.0
  %421 = vmatpush2.msra.mxu0 0.0
  %422 = vmatprep.subr.mxu0 0.0
  %423 = vmatpush2.msra.mxu0 0.0
  %424 = vmatprep.subr.mxu0 0.0
  %425 = vmatpush2.msra.mxu0 0.0
  %426 = vmatprep.subr.mxu0 0.0
  %427 = vmatpush2.msra.mxu0 0.0
  %428 = vmatprep.subr.mxu0 0.0
  %429 = vmatpush2.msra.mxu0 0.0
  %430 = vmatprep.subr.mxu0 0.0
  %431 = vmatpush2.msra.mxu0 0.0
  %432 = vmatprep.subr.mxu0 0.0
  %433 = vmatpush2.msra.mxu0 0.0
  %434 = vmatprep.subr.mxu0 0.0
  %435 = vmatpush2.msra.mxu0 0.0
  %436 = vmatprep.subr.mxu0 0.0
  %437 = vmatpush2.msra.mxu0 0.0
  %438 = vmatprep.subr.mxu0 0.0
  %439 = vmatpush2.msra.mxu0 0.0
  %440 = vmatprep.subr.mxu0 0.0
  %441 = vmatpush2.msra.mxu0 0.0
  %442 = vmatprep.subr.mxu0 0.0
  %443 = vmatpush2.msra.mxu0 0.0
  %444 = vmatprep.subr.mxu0 0.0
  %445 = vmatpush2.msra.mxu0 0.0
  %446 = vmatprep.subr.mxu0 0.0
  %447 = vmatpush2.msra.mxu0 0.0
  %448 = vmatprep.subr.mxu0 0.0
  %449 = vmatpush2.msra.mxu0 0.0
  %450 = vmatprep.mubr.f32.mxu0 0.0
  %451 = vmatmul.mubr.f32.gmra.mxu0 %v381
  %v452 = vpop.f32.mrf.mxu0
  %v453 = vadd.f32 0.0, %v452
  %v454 = vpop.f32.mrf.mxu0
  %v455 = vadd.f32 0.0, %v454
  %456 = vmatprep.mubr.f32.mxu0 0.0
  %457 = vmatmul.mubr.f32.gmra.mxu0 %v384
  %v458 = vpop.f32.mrf.mxu0
  %v459 = vadd.f32 0.0, %v458
  %v460 = vpop.f32.mrf.mxu0
  %v461 = vadd.f32 0.0, %v460
  %462 = vdwg.mxu0
  %463 = vmatprep.subr.mxu0 0.0
  %464 = vmatpush1.msra.mxu0 0.0
  %465 = vmatprep.subr.mxu0 0.0
  %466 = vmatpush1.msra.mxu0 0.0
  %467 = vmatprep.subr.mxu0 0.0
  %468 = vmatpush1.msra.mxu0 0.0
  %469 = vmatprep.subr.mxu0 0.0
  %470 = vmatpush1.msra.mxu0 0.0
  %471 = vmatprep.subr.mxu0 0.0
  %472 = vmatpush1.msra.mxu0 0.0
  %473 = vmatprep.subr.mxu0 0.0
  %474 = vmatpush1.msra.mxu0 0.0
  %475 = vmatprep.subr.mxu0 0.0
  %476 = vmatpush1.msra.mxu0 0.0
  %477 = vmatprep.subr.mxu0 0.0
  %478 = vmatpush1.msra.mxu0 0.0
  %479 = vmatprep.subr.mxu0 0.0
  %480 = vmatpush1.msra.mxu0 0.0
  %481 = vmatprep.subr.mxu0 0.0
  %482 = vmatpush1.msra.mxu0 0.0
  %483 = vmatprep.subr.mxu0 0.0
  %484 = vmatpush1.msra.mxu0 0.0
  %485 = vmatprep.subr.mxu0 0.0
  %486 = vmatpush1.msra.mxu0 0.0
  %487 = vmatprep.subr.mxu0 0.0
  %488 = vmatpush1.msra.mxu0 0.0
  %489 = vmatprep.subr.mxu0 0.0
  %490 = vmatpush1.msra.mxu0 0.0
  %491 = vmatprep.subr.mxu0 0.0
  %492 = vmatpush1.msra.mxu0 0.0
  %493 = vmatprep.subr.mxu0 0.0
  %494 = vmatpush1.msra.mxu0 %v374
  %495 = vmatprep.subr.mxu0 0.0
  %496 = vmatpush2.msra.mxu0 0.0
  %497 = vmatprep.subr.mxu0 0.0
  %498 = vmatpush2.msra.mxu0 0.0
  %499 = vmatprep.subr.mxu0 0.0
  %500 = vmatpush2.msra.mxu0 0.0
  %501 = vmatprep.subr.mxu0 0.0
  %502 = vmatpush2.msra.mxu0 0.0
  %503 = vmatprep.subr.mxu0 0.0
  %504 = vmatpush2.msra.mxu0 0.0
  %505 = vmatprep.subr.mxu0 0.0
  %506 = vmatpush2.msra.mxu0 0.0
  %507 = vmatprep.subr.mxu0 0.0
  %508 = vmatpush2.msra.mxu0 0.0
  %509 = vmatprep.subr.mxu0 0.0
  %510 = vmatpush2.msra.mxu0 0.0
  %511 = vmatprep.subr.mxu0 0.0
  %512 = vmatpush2.msra.mxu0 0.0
  %513 = vmatprep.subr.mxu0 0.0
  %514 = vmatpush2.msra.mxu0 0.0
  %515 = vmatprep.subr.mxu0 0.0
  %516 = vmatpush2.msra.mxu0 0.0
  %517 = vmatprep.subr.mxu0 0.0
  %518 = vmatpush2.msra.mxu0 0.0
  %519 = vmatprep.subr.mxu0 0.0
  %520 = vmatpush2.msra.mxu0 0.0
  %521 = vmatprep.subr.mxu0 0.0
  %522 = vmatpush2.msra.mxu0 0.0
  %523 = vmatprep.subr.mxu0 0.0
  %524 = vmatpush2.msra.mxu0 0.0
  %525 = vmatprep.subr.mxu0 0.0
  %526 = vmatpush2.msra.mxu0 0.0
  %527 = vmatprep.mubr.f32.mxu0 0.0
  %528 = vmatmul.mubr.f32.gmra.mxu0 %v381
  %v529 = vpop.f32.mrf.mxu0
  %v530 = vadd.f32 0.0, %v529
  %v531 = vpop.f32.mrf.mxu0
  %532 = vmatprep.mubr.f32.mxu0 0.0
  %533 = vmatmul.mubr.f32.gmra.mxu0 %v384
  %v534 = vpop.f32.mrf.mxu0
  %v535 = vadd.f32 0.0, %v534
  %v536 = vpop.f32.mrf.mxu0
  %537 = vdwg.mxu0
  %v538 = vadd.f32 %v282, %v453
  %v539 = vadd.f32 %v284, %v455
  %v540 = vadd.f32 %v359, %v530
  %v541 = vadd.f32 %v288, %v459
  %v542 = vadd.f32 %v290, %v461
  %v543 = vadd.f32 %v364, %v535
  %544 = vrot.lane.b32.xlu0 %v20, 1
  %v545 = vpop.permute.xlu0 %544
  %546 = vrot.lane.b32.xlu0 %v21, 1
  %v547 = vpop.permute.xlu0 %546
  %548 = vrot.lane.b32.xlu0 %v22, 1
  %v549 = vpop.permute.xlu0 %548
  %vm550 = vcmp.lt.s32.totalorder %v30, 1
  %v551 = vsel %vm550, %v547, %v549
  %v552 = vsel %vm550, %v545, %v547
  %v553 = vsel %vm550, %v549, %v545
  %s554 = scalar_lea.vmem %s1, 48
  %v555 = vld [vmem:[%s554] sm:$0xff]
  %v556 = vld [vmem:[%s554 + $0x8] sm:$0xff]
  %v558 = vsel %vm50, %v555, 0
  %v561 = vsel %vm50, %v556, 0
  %563 = vmatprep.subr.mxu0 0.0
  %564 = vmatpush1.msra.mxu0 0.0
  %565 = vmatprep.subr.mxu0 0.0
  %566 = vmatpush1.msra.mxu0 0.0
  %567 = vmatprep.subr.mxu0 0.0
  %568 = vmatpush1.msra.mxu0 0.0
  %569 = vmatprep.subr.mxu0 0.0
  %570 = vmatpush1.msra.mxu0 0.0
  %571 = vmatprep.subr.mxu0 0.0
  %572 = vmatpush1.msra.mxu0 0.0
  %573 = vmatprep.subr.mxu0 0.0
  %574 = vmatpush1.msra.mxu0 0.0
  %575 = vmatprep.subr.mxu0 0.0
  %576 = vmatpush1.msra.mxu0 0.0
  %577 = vmatprep.subr.mxu0 0.0
  %578 = vmatpush1.msra.mxu0 0.0
  %579 = vmatprep.subr.mxu0 0.0
  %580 = vmatpush1.msra.mxu0 0.0
  %581 = vmatprep.subr.mxu0 0.0
  %582 = vmatpush1.msra.mxu0 0.0
  %583 = vmatprep.subr.mxu0 0.0
  %584 = vmatpush1.msra.mxu0 0.0
  %585 = vmatprep.subr.mxu0 0.0
  %586 = vmatpush1.msra.mxu0 0.0
  %587 = vmatprep.subr.mxu0 0.0
  %588 = vmatpush1.msra.mxu0 0.0
  %589 = vmatprep.subr.mxu0 0.0
  %590 = vmatpush1.msra.mxu0 0.0
  %591 = vmatprep.subr.mxu0 0.0
  %592 = vmatpush1.msra.mxu0 0.0
  %593 = vmatprep.subr.mxu0 %v552
  %594 = vmatpush1.msra.mxu0 %v553
  %595 = vmatprep.subr.mxu0 0.0
  %596 = vmatpush2.msra.mxu0 0.0
  %597 = vmatprep.subr.mxu0 0.0
  %598 = vmatpush2.msra.mxu0 0.0
  %599 = vmatprep.subr.mxu0 0.0
  %600 = vmatpush2.msra.mxu0 0.0
  %601 = vmatprep.subr.mxu0 0.0
  %602 = vmatpush2.msra.mxu0 0.0
  %603 = vmatprep.subr.mxu0 0.0
  %604 = vmatpush2.msra.mxu0 0.0
  %605 = vmatprep.subr.mxu0 0.0
  %606 = vmatpush2.msra.mxu0 0.0
  %607 = vmatprep.subr.mxu0 0.0
  %608 = vmatpush2.msra.mxu0 0.0
  %609 = vmatprep.subr.mxu0 0.0
  %610 = vmatpush2.msra.mxu0 0.0
  %611 = vmatprep.subr.mxu0 0.0
  %612 = vmatpush2.msra.mxu0 0.0
  %613 = vmatprep.subr.mxu0 0.0
  %614 = vmatpush2.msra.mxu0 0.0
  %615 = vmatprep.subr.mxu0 0.0
  %616 = vmatpush2.msra.mxu0 0.0
  %617 = vmatprep.subr.mxu0 0.0
  %618 = vmatpush2.msra.mxu0 0.0
  %619 = vmatprep.subr.mxu0 0.0
  %620 = vmatpush2.msra.mxu0 0.0
  %621 = vmatprep.subr.mxu0 0.0
  %622 = vmatpush2.msra.mxu0 0.0
  %623 = vmatprep.subr.mxu0 0.0
  %624 = vmatpush2.msra.mxu0 0.0
  %625 = vmatprep.subr.mxu0 0.0
  %626 = vmatpush2.msra.mxu0 0.0
  %627 = vmatprep.mubr.f32.mxu0 0.0
  %628 = vmatmul.mubr.f32.gmra.mxu0 %v558
  %v629 = vpop.f32.mrf.mxu0
  %v630 = vadd.f32 0.0, %v629
  %v631 = vpop.f32.mrf.mxu0
  %v632 = vadd.f32 0.0, %v631
  %633 = vmatprep.mubr.f32.mxu0 0.0
  %634 = vmatmul.mubr.f32.gmra.mxu0 %v561
  %v635 = vpop.f32.mrf.mxu0
  %v636 = vadd.f32 0.0, %v635
  %v637 = vpop.f32.mrf.mxu0
  %v638 = vadd.f32 0.0, %v637
  %639 = vdwg.mxu0
  %640 = vmatprep.subr.mxu0 0.0
  %641 = vmatpush1.msra.mxu0 0.0
  %642 = vmatprep.subr.mxu0 0.0
  %643 = vmatpush1.msra.mxu0 0.0
  %644 = vmatprep.subr.mxu0 0.0
  %645 = vmatpush1.msra.mxu0 0.0
  %646 = vmatprep.subr.mxu0 0.0
  %647 = vmatpush1.msra.mxu0 0.0
  %648 = vmatprep.subr.mxu0 0.0
  %649 = vmatpush1.msra.mxu0 0.0
  %650 = vmatprep.subr.mxu0 0.0
  %651 = vmatpush1.msra.mxu0 0.0
  %652 = vmatprep.subr.mxu0 0.0
  %653 = vmatpush1.msra.mxu0 0.0
  %654 = vmatprep.subr.mxu0 0.0
  %655 = vmatpush1.msra.mxu0 0.0
  %656 = vmatprep.subr.mxu0 0.0
  %657 = vmatpush1.msra.mxu0 0.0
  %658 = vmatprep.subr.mxu0 0.0
  %659 = vmatpush1.msra.mxu0 0.0
  %660 = vmatprep.subr.mxu0 0.0
  %661 = vmatpush1.msra.mxu0 0.0
  %662 = vmatprep.subr.mxu0 0.0
  %663 = vmatpush1.msra.mxu0 0.0
  %664 = vmatprep.subr.mxu0 0.0
  %665 = vmatpush1.msra.mxu0 0.0
  %666 = vmatprep.subr.mxu0 0.0
  %667 = vmatpush1.msra.mxu0 0.0
  %668 = vmatprep.subr.mxu0 0.0
  %669 = vmatpush1.msra.mxu0 0.0
  %670 = vmatprep.subr.mxu0 0.0
  %671 = vmatpush1.msra.mxu0 %v551
  %672 = vmatprep.subr.mxu0 0.0
  %673 = vmatpush2.msra.mxu0 0.0
  %674 = vmatprep.subr.mxu0 0.0
  %675 = vmatpush2.msra.mxu0 0.0
  %676 = vmatprep.subr.mxu0 0.0
  %677 = vmatpush2.msra.mxu0 0.0
  %678 = vmatprep.subr.mxu0 0.0
  %679 = vmatpush2.msra.mxu0 0.0
  %680 = vmatprep.subr.mxu0 0.0
  %681 = vmatpush2.msra.mxu0 0.0
  %682 = vmatprep.subr.mxu0 0.0
  %683 = vmatpush2.msra.mxu0 0.0
  %684 = vmatprep.subr.mxu0 0.0
  %685 = vmatpush2.msra.mxu0 0.0
  %686 = vmatprep.subr.mxu0 0.0
  %687 = vmatpush2.msra.mxu0 0.0
  %688 = vmatprep.subr.mxu0 0.0
  %689 = vmatpush2.msra.mxu0 0.0
  %690 = vmatprep.subr.mxu0 0.0
  %691 = vmatpush2.msra.mxu0 0.0
  %692 = vmatprep.subr.mxu0 0.0
  %693 = vmatpush2.msra.mxu0 0.0
  %694 = vmatprep.subr.mxu0 0.0
  %695 = vmatpush2.msra.mxu0 0.0
  %696 = vmatprep.subr.mxu0 0.0
  %697 = vmatpush2.msra.mxu0 0.0
  %698 = vmatprep.subr.mxu0 0.0
  %699 = vmatpush2.msra.mxu0 0.0
  %700 = vmatprep.subr.mxu0 0.0
  %701 = vmatpush2.msra.mxu0 0.0
  %702 = vmatprep.subr.mxu0 0.0
  %703 = vmatpush2.msra.mxu0 0.0
  %704 = vmatprep.mubr.f32.mxu0 0.0
  %705 = vmatmul.mubr.f32.gmra.mxu0 %v558
  %v706 = vpop.f32.mrf.mxu0
  %v707 = vadd.f32 0.0, %v706
  %v708 = vpop.f32.mrf.mxu0
  %709 = vmatprep.mubr.f32.mxu0 0.0
  %710 = vmatmul.mubr.f32.gmra.mxu0 %v561
  %v711 = vpop.f32.mrf.mxu0
  %v712 = vadd.f32 0.0, %v711
  %v713 = vpop.f32.mrf.mxu0
  %714 = vdwg.mxu0
  %v715 = vadd.f32 %v538, %v630
  %v716 = vadd.f32 %v539, %v632
  %v717 = vadd.f32 %v540, %v707
  %v718 = vadd.f32 %v541, %v636
  %v719 = vadd.f32 %v542, %v638
  %v720 = vadd.f32 %v543, %v712
  %s721 = scalar_lea.vmem %s1, 64
  %v722 = vld [vmem:[%s721] sm:$0xff]
  %v723 = vld [vmem:[%s721 + $0x8] sm:$0xff]
  %v725 = vsel %vm50, %v722, 0
  %v728 = vsel %vm50, %v723, 0
  %730 = vmatprep.subr.mxu0 0.0
  %731 = vmatpush1.msra.mxu0 0.0
  %732 = vmatprep.subr.mxu0 0.0
  %733 = vmatpush1.msra.mxu0 0.0
  %734 = vmatprep.subr.mxu0 0.0
  %735 = vmatpush1.msra.mxu0 0.0
  %736 = vmatprep.subr.mxu0 0.0
  %737 = vmatpush1.msra.mxu0 0.0
  %738 = vmatprep.subr.mxu0 0.0
  %739 = vmatpush1.msra.mxu0 0.0
  %740 = vmatprep.subr.mxu0 0.0
  %741 = vmatpush1.msra.mxu0 0.0
  %742 = vmatprep.subr.mxu0 0.0
  %743 = vmatpush1.msra.mxu0 0.0
  %744 = vmatprep.subr.mxu0 0.0
  %745 = vmatpush1.msra.mxu0 0.0
  %746 = vmatprep.subr.mxu0 0.0
  %747 = vmatpush1.msra.mxu0 0.0
  %748 = vmatprep.subr.mxu0 0.0
  %749 = vmatpush1.msra.mxu0 0.0
  %750 = vmatprep.subr.mxu0 0.0
  %751 = vmatpush1.msra.mxu0 0.0
  %752 = vmatprep.subr.mxu0 0.0
  %753 = vmatpush1.msra.mxu0 0.0
  %754 = vmatprep.subr.mxu0 0.0
  %755 = vmatpush1.msra.mxu0 0.0
  %756 = vmatprep.subr.mxu0 0.0
  %757 = vmatpush1.msra.mxu0 0.0
  %758 = vmatprep.subr.mxu0 0.0
  %759 = vmatpush1.msra.mxu0 0.0
  %760 = vmatprep.subr.mxu0 %v21
  %761 = vmatpush1.msra.mxu0 %v20
  %762 = vmatprep.subr.mxu0 0.0
  %763 = vmatpush2.msra.mxu0 0.0
  %764 = vmatprep.subr.mxu0 0.0
  %765 = vmatpush2.msra.mxu0 0.0
  %766 = vmatprep.subr.mxu0 0.0
  %767 = vmatpush2.msra.mxu0 0.0
  %768 = vmatprep.subr.mxu0 0.0
  %769 = vmatpush2.msra.mxu0 0.0
  %770 = vmatprep.subr.mxu0 0.0
  %771 = vmatpush2.msra.mxu0 0.0
  %772 = vmatprep.subr.mxu0 0.0
  %773 = vmatpush2.msra.mxu0 0.0
  %774 = vmatprep.subr.mxu0 0.0
  %775 = vmatpush2.msra.mxu0 0.0
  %776 = vmatprep.subr.mxu0 0.0
  %777 = vmatpush2.msra.mxu0 0.0
  %778 = vmatprep.subr.mxu0 0.0
  %779 = vmatpush2.msra.mxu0 0.0
  %780 = vmatprep.subr.mxu0 0.0
  %781 = vmatpush2.msra.mxu0 0.0
  %782 = vmatprep.subr.mxu0 0.0
  %783 = vmatpush2.msra.mxu0 0.0
  %784 = vmatprep.subr.mxu0 0.0
  %785 = vmatpush2.msra.mxu0 0.0
  %786 = vmatprep.subr.mxu0 0.0
  %787 = vmatpush2.msra.mxu0 0.0
  %788 = vmatprep.subr.mxu0 0.0
  %789 = vmatpush2.msra.mxu0 0.0
  %790 = vmatprep.subr.mxu0 0.0
  %791 = vmatpush2.msra.mxu0 0.0
  %792 = vmatprep.subr.mxu0 0.0
  %793 = vmatpush2.msra.mxu0 0.0
  %794 = vmatprep.mubr.f32.mxu0 0.0
  %795 = vmatmul.mubr.f32.gmra.mxu0 %v725
  %v796 = vpop.f32.mrf.mxu0
  %v797 = vadd.f32 0.0, %v796
  %v798 = vpop.f32.mrf.mxu0
  %v799 = vadd.f32 0.0, %v798
  %800 = vmatprep.mubr.f32.mxu0 0.0
  %801 = vmatmul.mubr.f32.gmra.mxu0 %v728
  %v802 = vpop.f32.mrf.mxu0
  %v803 = vadd.f32 0.0, %v802
  %v804 = vpop.f32.mrf.mxu0
  %v805 = vadd.f32 0.0, %v804
  %806 = vdwg.mxu0
  %807 = vmatprep.subr.mxu0 0.0
  %808 = vmatpush1.msra.mxu0 0.0
  %809 = vmatprep.subr.mxu0 0.0
  %810 = vmatpush1.msra.mxu0 0.0
  %811 = vmatprep.subr.mxu0 0.0
  %812 = vmatpush1.msra.mxu0 0.0
  %813 = vmatprep.subr.mxu0 0.0
  %814 = vmatpush1.msra.mxu0 0.0
  %815 = vmatprep.subr.mxu0 0.0
  %816 = vmatpush1.msra.mxu0 0.0
  %817 = vmatprep.subr.mxu0 0.0
  %818 = vmatpush1.msra.mxu0 0.0
  %819 = vmatprep.subr.mxu0 0.0
  %820 = vmatpush1.msra.mxu0 0.0
  %821 = vmatprep.subr.mxu0 0.0
  %822 = vmatpush1.msra.mxu0 0.0
  %823 = vmatprep.subr.mxu0 0.0
  %824 = vmatpush1.msra.mxu0 0.0
  %825 = vmatprep.subr.mxu0 0.0
  %826 = vmatpush1.msra.mxu0 0.0
  %827 = vmatprep.subr.mxu0 0.0
  %828 = vmatpush1.msra.mxu0 0.0
  %829 = vmatprep.subr.mxu0 0.0
  %830 = vmatpush1.msra.mxu0 0.0
  %831 = vmatprep.subr.mxu0 0.0
  %832 = vmatpush1.msra.mxu0 0.0
  %833 = vmatprep.subr.mxu0 0.0
  %834 = vmatpush1.msra.mxu0 0.0
  %835 = vmatprep.subr.mxu0 0.0
  %836 = vmatpush1.msra.mxu0 0.0
  %837 = vmatprep.subr.mxu0 0.0
  %838 = vmatpush1.msra.mxu0 %v22
  %839 = vmatprep.subr.mxu0 0.0
  %840 = vmatpush2.msra.mxu0 0.0
  %841 = vmatprep.subr.mxu0 0.0
  %842 = vmatpush2.msra.mxu0 0.0
  %843 = vmatprep.subr.mxu0 0.0
  %844 = vmatpush2.msra.mxu0 0.0
  %845 = vmatprep.subr.mxu0 0.0
  %846 = vmatpush2.msra.mxu0 0.0
  %847 = vmatprep.subr.mxu0 0.0
  %848 = vmatpush2.msra.mxu0 0.0
  %849 = vmatprep.subr.mxu0 0.0
  %850 = vmatpush2.msra.mxu0 0.0
  %851 = vmatprep.subr.mxu0 0.0
  %852 = vmatpush2.msra.mxu0 0.0
  %853 = vmatprep.subr.mxu0 0.0
  %854 = vmatpush2.msra.mxu0 0.0
  %855 = vmatprep.subr.mxu0 0.0
  %856 = vmatpush2.msra.mxu0 0.0
  %857 = vmatprep.subr.mxu0 0.0
  %858 = vmatpush2.msra.mxu0 0.0
  %859 = vmatprep.subr.mxu0 0.0
  %860 = vmatpush2.msra.mxu0 0.0
  %861 = vmatprep.subr.mxu0 0.0
  %862 = vmatpush2.msra.mxu0 0.0
  %863 = vmatprep.subr.mxu0 0.0
  %864 = vmatpush2.msra.mxu0 0.0
  %865 = vmatprep.subr.mxu0 0.0
  %866 = vmatpush2.msra.mxu0 0.0
  %867 = vmatprep.subr.mxu0 0.0
  %868 = vmatpush2.msra.mxu0 0.0
  %869 = vmatprep.subr.mxu0 0.0
  %870 = vmatpush2.msra.mxu0 0.0
  %871 = vmatprep.mubr.f32.mxu0 0.0
  %872 = vmatmul.mubr.f32.gmra.mxu0 %v725
  %v873 = vpop.f32.mrf.mxu0
  %v874 = vadd.f32 0.0, %v873
  %v875 = vpop.f32.mrf.mxu0
  %876 = vmatprep.mubr.f32.mxu0 0.0
  %877 = vmatmul.mubr.f32.gmra.mxu0 %v728
  %v878 = vpop.f32.mrf.mxu0
  %v879 = vadd.f32 0.0, %v878
  %v880 = vpop.f32.mrf.mxu0
  %881 = vdwg.mxu0
  %v882 = vadd.f32 %v715, %v797
  %v883 = vadd.f32 %v716, %v799
  %v884 = vadd.f32 %v717, %v874
  %v885 = vadd.f32 %v718, %v803
  %v886 = vadd.f32 %v719, %v805
  %v887 = vadd.f32 %v720, %v879
  %888 = vrot.lane.b32.xlu0 %v20, 127
  %v889 = vpop.permute.xlu0 %888
  %890 = vrot.lane.b32.xlu0 %v21, 127
  %v891 = vpop.permute.xlu0 %890
  %892 = vrot.lane.b32.xlu0 %v22, 127
  %v893 = vpop.permute.xlu0 %892
  %vm894 = vcmp.lt.s32.totalorder %v30, 127
  %v895 = vsel %vm894, %v891, %v893
  %v896 = vsel %vm894, %v889, %v891
  %v897 = vsel %vm894, %v893, %v889
  %s898 = scalar_lea.vmem %s1, 80
  %v899 = vld [vmem:[%s898] sm:$0xff]
  %v900 = vld [vmem:[%s898 + $0x8] sm:$0xff]
  %v902 = vsel %vm50, %v899, 0
  %v905 = vsel %vm50, %v900, 0
  %907 = vmatprep.subr.mxu0 0.0
  %908 = vmatpush1.msra.mxu0 0.0
  %909 = vmatprep.subr.mxu0 0.0
  %910 = vmatpush1.msra.mxu0 0.0
  %911 = vmatprep.subr.mxu0 0.0
  %912 = vmatpush1.msra.mxu0 0.0
  %913 = vmatprep.subr.mxu0 0.0
  %914 = vmatpush1.msra.mxu0 0.0
  %915 = vmatprep.subr.mxu0 0.0
  %916 = vmatpush1.msra.mxu0 0.0
  %917 = vmatprep.subr.mxu0 0.0
  %918 = vmatpush1.msra.mxu0 0.0
  %919 = vmatprep.subr.mxu0 0.0
  %920 = vmatpush1.msra.mxu0 0.0
  %921 = vmatprep.subr.mxu0 0.0
  %922 = vmatpush1.msra.mxu0 0.0
  %923 = vmatprep.subr.mxu0 0.0
  %924 = vmatpush1.msra.mxu0 0.0
  %925 = vmatprep.subr.mxu0 0.0
  %926 = vmatpush1.msra.mxu0 0.0
  %927 = vmatprep.subr.mxu0 0.0
  %928 = vmatpush1.msra.mxu0 0.0
  %929 = vmatprep.subr.mxu0 0.0
  %930 = vmatpush1.msra.mxu0 0.0
  %931 = vmatprep.subr.mxu0 0.0
  %932 = vmatpush1.msra.mxu0 0.0
  %933 = vmatprep.subr.mxu0 0.0
  %934 = vmatpush1.msra.mxu0 0.0
  %935 = vmatprep.subr.mxu0 0.0
  %936 = vmatpush1.msra.mxu0 0.0
  %937 = vmatprep.subr.mxu0 %v895
  %938 = vmatpush1.msra.mxu0 %v896
  %939 = vmatprep.subr.mxu0 0.0
  %940 = vmatpush2.msra.mxu0 0.0
  %941 = vmatprep.subr.mxu0 0.0
  %942 = vmatpush2.msra.mxu0 0.0
  %943 = vmatprep.subr.mxu0 0.0
  %944 = vmatpush2.msra.mxu0 0.0
  %945 = vmatprep.subr.mxu0 0.0
  %946 = vmatpush2.msra.mxu0 0.0
  %947 = vmatprep.subr.mxu0 0.0
  %948 = vmatpush2.msra.mxu0 0.0
  %949 = vmatprep.subr.mxu0 0.0
  %950 = vmatpush2.msra.mxu0 0.0
  %951 = vmatprep.subr.mxu0 0.0
  %952 = vmatpush2.msra.mxu0 0.0
  %953 = vmatprep.subr.mxu0 0.0
  %954 = vmatpush2.msra.mxu0 0.0
  %955 = vmatprep.subr.mxu0 0.0
  %956 = vmatpush2.msra.mxu0 0.0
  %957 = vmatprep.subr.mxu0 0.0
  %958 = vmatpush2.msra.mxu0 0.0
  %959 = vmatprep.subr.mxu0 0.0
  %960 = vmatpush2.msra.mxu0 0.0
  %961 = vmatprep.subr.mxu0 0.0
  %962 = vmatpush2.msra.mxu0 0.0
  %963 = vmatprep.subr.mxu0 0.0
  %964 = vmatpush2.msra.mxu0 0.0
  %965 = vmatprep.subr.mxu0 0.0
  %966 = vmatpush2.msra.mxu0 0.0
  %967 = vmatprep.subr.mxu0 0.0
  %968 = vmatpush2.msra.mxu0 0.0
  %969 = vmatprep.subr.mxu0 0.0
  %970 = vmatpush2.msra.mxu0 0.0
  %971 = vmatprep.mubr.f32.mxu0 0.0
  %972 = vmatmul.mubr.f32.gmra.mxu0 %v902
  %v973 = vpop.f32.mrf.mxu0
  %v974 = vadd.f32 0.0, %v973
  %v975 = vpop.f32.mrf.mxu0
  %v976 = vadd.f32 0.0, %v975
  %977 = vmatprep.mubr.f32.mxu0 0.0
  %978 = vmatmul.mubr.f32.gmra.mxu0 %v905
  %v979 = vpop.f32.mrf.mxu0
  %v980 = vadd.f32 0.0, %v979
  %v981 = vpop.f32.mrf.mxu0
  %v982 = vadd.f32 0.0, %v981
  %983 = vdwg.mxu0
  %984 = vmatprep.subr.mxu0 0.0
  %985 = vmatpush1.msra.mxu0 0.0
  %986 = vmatprep.subr.mxu0 0.0
  %987 = vmatpush1.msra.mxu0 0.0
  %988 = vmatprep.subr.mxu0 0.0
  %989 = vmatpush1.msra.mxu0 0.0
  %990 = vmatprep.subr.mxu0 0.0
  %991 = vmatpush1.msra.mxu0 0.0
  %992 = vmatprep.subr.mxu0 0.0
  %993 = vmatpush1.msra.mxu0 0.0
  %994 = vmatprep.subr.mxu0 0.0
  %995 = vmatpush1.msra.mxu0 0.0
  %996 = vmatprep.subr.mxu0 0.0
  %997 = vmatpush1.msra.mxu0 0.0
  %998 = vmatprep.subr.mxu0 0.0
  %999 = vmatpush1.msra.mxu0 0.0
  %1000 = vmatprep.subr.mxu0 0.0
  %1001 = vmatpush1.msra.mxu0 0.0
  %1002 = vmatprep.subr.mxu0 0.0
  %1003 = vmatpush1.msra.mxu0 0.0
  %1004 = vmatprep.subr.mxu0 0.0
  %1005 = vmatpush1.msra.mxu0 0.0
  %1006 = vmatprep.subr.mxu0 0.0
  %1007 = vmatpush1.msra.mxu0 0.0
  %1008 = vmatprep.subr.mxu0 0.0
  %1009 = vmatpush1.msra.mxu0 0.0
  %1010 = vmatprep.subr.mxu0 0.0
  %1011 = vmatpush1.msra.mxu0 0.0
  %1012 = vmatprep.subr.mxu0 0.0
  %1013 = vmatpush1.msra.mxu0 0.0
  %1014 = vmatprep.subr.mxu0 0.0
  %1015 = vmatpush1.msra.mxu0 %v897
  %1016 = vmatprep.subr.mxu0 0.0
  %1017 = vmatpush2.msra.mxu0 0.0
  %1018 = vmatprep.subr.mxu0 0.0
  %1019 = vmatpush2.msra.mxu0 0.0
  %1020 = vmatprep.subr.mxu0 0.0
  %1021 = vmatpush2.msra.mxu0 0.0
  %1022 = vmatprep.subr.mxu0 0.0
  %1023 = vmatpush2.msra.mxu0 0.0
  %1024 = vmatprep.subr.mxu0 0.0
  %1025 = vmatpush2.msra.mxu0 0.0
  %1026 = vmatprep.subr.mxu0 0.0
  %1027 = vmatpush2.msra.mxu0 0.0
  %1028 = vmatprep.subr.mxu0 0.0
  %1029 = vmatpush2.msra.mxu0 0.0
  %1030 = vmatprep.subr.mxu0 0.0
  %1031 = vmatpush2.msra.mxu0 0.0
  %1032 = vmatprep.subr.mxu0 0.0
  %1033 = vmatpush2.msra.mxu0 0.0
  %1034 = vmatprep.subr.mxu0 0.0
  %1035 = vmatpush2.msra.mxu0 0.0
  %1036 = vmatprep.subr.mxu0 0.0
  %1037 = vmatpush2.msra.mxu0 0.0
  %1038 = vmatprep.subr.mxu0 0.0
  %1039 = vmatpush2.msra.mxu0 0.0
  %1040 = vmatprep.subr.mxu0 0.0
  %1041 = vmatpush2.msra.mxu0 0.0
  %1042 = vmatprep.subr.mxu0 0.0
  %1043 = vmatpush2.msra.mxu0 0.0
  %1044 = vmatprep.subr.mxu0 0.0
  %1045 = vmatpush2.msra.mxu0 0.0
  %1046 = vmatprep.subr.mxu0 0.0
  %1047 = vmatpush2.msra.mxu0 0.0
  %1048 = vmatprep.mubr.f32.mxu0 0.0
  %1049 = vmatmul.mubr.f32.gmra.mxu0 %v902
  %v1050 = vpop.f32.mrf.mxu0
  %v1051 = vadd.f32 0.0, %v1050
  %v1052 = vpop.f32.mrf.mxu0
  %1053 = vmatprep.mubr.f32.mxu0 0.0
  %1054 = vmatmul.mubr.f32.gmra.mxu0 %v905
  %v1055 = vpop.f32.mrf.mxu0
  %v1056 = vadd.f32 0.0, %v1055
  %v1057 = vpop.f32.mrf.mxu0
  %1058 = vdwg.mxu0
  %v1059 = vadd.f32 %v882, %v974
  %v1060 = vadd.f32 %v883, %v976
  %v1061 = vadd.f32 %v884, %v1051
  %v1062 = vadd.f32 %v885, %v980
  %v1063 = vadd.f32 %v886, %v982
  %v1064 = vadd.f32 %v887, %v1056
  %1065 = vrot.lane.b32.xlu0 %v20, 111
  %v1066 = vpop.permute.xlu0 %1065
  %1067 = vrot.lane.b32.xlu0 %v21, 111
  %v1068 = vpop.permute.xlu0 %1067
  %1069 = vrot.lane.b32.xlu0 %v22, 111
  %v1070 = vpop.permute.xlu0 %1069
  %vm1071 = vcmp.lt.s32.totalorder %v30, 111
  %v1072 = vsel %vm1071, %v1068, %v1070
  %v1073 = vsel %vm1071, %v1066, %v1068
  %v1074 = vsel %vm1071, %v1070, %v1066
  %s1075 = scalar_lea.vmem %s1, 96
  %v1076 = vld [vmem:[%s1075] sm:$0xff]
  %v1077 = vld [vmem:[%s1075 + $0x8] sm:$0xff]
  %v1079 = vsel %vm50, %v1076, 0
  %v1082 = vsel %vm50, %v1077, 0
  %1084 = vmatprep.subr.mxu0 0.0
  %1085 = vmatpush1.msra.mxu0 0.0
  %1086 = vmatprep.subr.mxu0 0.0
  %1087 = vmatpush1.msra.mxu0 0.0
  %1088 = vmatprep.subr.mxu0 0.0
  %1089 = vmatpush1.msra.mxu0 0.0
  %1090 = vmatprep.subr.mxu0 0.0
  %1091 = vmatpush1.msra.mxu0 0.0
  %1092 = vmatprep.subr.mxu0 0.0
  %1093 = vmatpush1.msra.mxu0 0.0
  %1094 = vmatprep.subr.mxu0 0.0
  %1095 = vmatpush1.msra.mxu0 0.0
  %1096 = vmatprep.subr.mxu0 0.0
  %1097 = vmatpush1.msra.mxu0 0.0
  %1098 = vmatprep.subr.mxu0 0.0
  %1099 = vmatpush1.msra.mxu0 0.0
  %1100 = vmatprep.subr.mxu0 0.0
  %1101 = vmatpush1.msra.mxu0 0.0
  %1102 = vmatprep.subr.mxu0 0.0
  %1103 = vmatpush1.msra.mxu0 0.0
  %1104 = vmatprep.subr.mxu0 0.0
  %1105 = vmatpush1.msra.mxu0 0.0
  %1106 = vmatprep.subr.mxu0 0.0
  %1107 = vmatpush1.msra.mxu0 0.0
  %1108 = vmatprep.subr.mxu0 0.0
  %1109 = vmatpush1.msra.mxu0 0.0
  %1110 = vmatprep.subr.mxu0 0.0
  %1111 = vmatpush1.msra.mxu0 0.0
  %1112 = vmatprep.subr.mxu0 0.0
  %1113 = vmatpush1.msra.mxu0 0.0
  %1114 = vmatprep.subr.mxu0 %v1072
  %1115 = vmatpush1.msra.mxu0 %v1073
  %1116 = vmatprep.subr.mxu0 0.0
  %1117 = vmatpush2.msra.mxu0 0.0
  %1118 = vmatprep.subr.mxu0 0.0
  %1119 = vmatpush2.msra.mxu0 0.0
  %1120 = vmatprep.subr.mxu0 0.0
  %1121 = vmatpush2.msra.mxu0 0.0
  %1122 = vmatprep.subr.mxu0 0.0
  %1123 = vmatpush2.msra.mxu0 0.0
  %1124 = vmatprep.subr.mxu0 0.0
  %1125 = vmatpush2.msra.mxu0 0.0
  %1126 = vmatprep.subr.mxu0 0.0
  %1127 = vmatpush2.msra.mxu0 0.0
  %1128 = vmatprep.subr.mxu0 0.0
  %1129 = vmatpush2.msra.mxu0 0.0
  %1130 = vmatprep.subr.mxu0 0.0
  %1131 = vmatpush2.msra.mxu0 0.0
  %1132 = vmatprep.subr.mxu0 0.0
  %1133 = vmatpush2.msra.mxu0 0.0
  %1134 = vmatprep.subr.mxu0 0.0
  %1135 = vmatpush2.msra.mxu0 0.0
  %1136 = vmatprep.subr.mxu0 0.0
  %1137 = vmatpush2.msra.mxu0 0.0
  %1138 = vmatprep.subr.mxu0 0.0
  %1139 = vmatpush2.msra.mxu0 0.0
  %1140 = vmatprep.subr.mxu0 0.0
  %1141 = vmatpush2.msra.mxu0 0.0
  %1142 = vmatprep.subr.mxu0 0.0
  %1143 = vmatpush2.msra.mxu0 0.0
  %1144 = vmatprep.subr.mxu0 0.0
  %1145 = vmatpush2.msra.mxu0 0.0
  %1146 = vmatprep.subr.mxu0 0.0
  %1147 = vmatpush2.msra.mxu0 0.0
  %1148 = vmatprep.mubr.f32.mxu0 0.0
  %1149 = vmatmul.mubr.f32.gmra.mxu0 %v1079
  %v1150 = vpop.f32.mrf.mxu0
  %v1151 = vadd.f32 0.0, %v1150
  %v1152 = vpop.f32.mrf.mxu0
  %v1153 = vadd.f32 0.0, %v1152
  %1154 = vmatprep.mubr.f32.mxu0 0.0
  %1155 = vmatmul.mubr.f32.gmra.mxu0 %v1082
  %v1156 = vpop.f32.mrf.mxu0
  %v1157 = vadd.f32 0.0, %v1156
  %v1158 = vpop.f32.mrf.mxu0
  %v1159 = vadd.f32 0.0, %v1158
  %1160 = vdwg.mxu0
  %1161 = vmatprep.subr.mxu0 0.0
  %1162 = vmatpush1.msra.mxu0 0.0
  %1163 = vmatprep.subr.mxu0 0.0
  %1164 = vmatpush1.msra.mxu0 0.0
  %1165 = vmatprep.subr.mxu0 0.0
  %1166 = vmatpush1.msra.mxu0 0.0
  %1167 = vmatprep.subr.mxu0 0.0
  %1168 = vmatpush1.msra.mxu0 0.0
  %1169 = vmatprep.subr.mxu0 0.0
  %1170 = vmatpush1.msra.mxu0 0.0
  %1171 = vmatprep.subr.mxu0 0.0
  %1172 = vmatpush1.msra.mxu0 0.0
  %1173 = vmatprep.subr.mxu0 0.0
  %1174 = vmatpush1.msra.mxu0 0.0
  %1175 = vmatprep.subr.mxu0 0.0
  %1176 = vmatpush1.msra.mxu0 0.0
  %1177 = vmatprep.subr.mxu0 0.0
  %1178 = vmatpush1.msra.mxu0 0.0
  %1179 = vmatprep.subr.mxu0 0.0
  %1180 = vmatpush1.msra.mxu0 0.0
  %1181 = vmatprep.subr.mxu0 0.0
  %1182 = vmatpush1.msra.mxu0 0.0
  %1183 = vmatprep.subr.mxu0 0.0
  %1184 = vmatpush1.msra.mxu0 0.0
  %1185 = vmatprep.subr.mxu0 0.0
  %1186 = vmatpush1.msra.mxu0 0.0
  %1187 = vmatprep.subr.mxu0 0.0
  %1188 = vmatpush1.msra.mxu0 0.0
  %1189 = vmatprep.subr.mxu0 0.0
  %1190 = vmatpush1.msra.mxu0 0.0
  %1191 = vmatprep.subr.mxu0 0.0
  %1192 = vmatpush1.msra.mxu0 %v1074
  %1193 = vmatprep.subr.mxu0 0.0
  %1194 = vmatpush2.msra.mxu0 0.0
  %1195 = vmatprep.subr.mxu0 0.0
  %1196 = vmatpush2.msra.mxu0 0.0
  %1197 = vmatprep.subr.mxu0 0.0
  %1198 = vmatpush2.msra.mxu0 0.0
  %1199 = vmatprep.subr.mxu0 0.0
  %1200 = vmatpush2.msra.mxu0 0.0
  %1201 = vmatprep.subr.mxu0 0.0
  %1202 = vmatpush2.msra.mxu0 0.0
  %1203 = vmatprep.subr.mxu0 0.0
  %1204 = vmatpush2.msra.mxu0 0.0
  %1205 = vmatprep.subr.mxu0 0.0
  %1206 = vmatpush2.msra.mxu0 0.0
  %1207 = vmatprep.subr.mxu0 0.0
  %1208 = vmatpush2.msra.mxu0 0.0
  %1209 = vmatprep.subr.mxu0 0.0
  %1210 = vmatpush2.msra.mxu0 0.0
  %1211 = vmatprep.subr.mxu0 0.0
  %1212 = vmatpush2.msra.mxu0 0.0
  %1213 = vmatprep.subr.mxu0 0.0
  %1214 = vmatpush2.msra.mxu0 0.0
  %1215 = vmatprep.subr.mxu0 0.0
  %1216 = vmatpush2.msra.mxu0 0.0
  %1217 = vmatprep.subr.mxu0 0.0
  %1218 = vmatpush2.msra.mxu0 0.0
  %1219 = vmatprep.subr.mxu0 0.0
  %1220 = vmatpush2.msra.mxu0 0.0
  %1221 = vmatprep.subr.mxu0 0.0
  %1222 = vmatpush2.msra.mxu0 0.0
  %1223 = vmatprep.subr.mxu0 0.0
  %1224 = vmatpush2.msra.mxu0 0.0
  %1225 = vmatprep.mubr.f32.mxu0 0.0
  %1226 = vmatmul.mubr.f32.gmra.mxu0 %v1079
  %v1227 = vpop.f32.mrf.mxu0
  %v1228 = vadd.f32 0.0, %v1227
  %v1229 = vpop.f32.mrf.mxu0
  %1230 = vmatprep.mubr.f32.mxu0 0.0
  %1231 = vmatmul.mubr.f32.gmra.mxu0 %v1082
  %v1232 = vpop.f32.mrf.mxu0
  %v1233 = vadd.f32 0.0, %v1232
  %v1234 = vpop.f32.mrf.mxu0
  %1235 = vdwg.mxu0
  %v1236 = vadd.f32 %v1059, %v1151
  %v1237 = vadd.f32 %v1060, %v1153
  %v1238 = vadd.f32 %v1061, %v1228
  %v1239 = vadd.f32 %v1062, %v1157
  %v1240 = vadd.f32 %v1063, %v1159
  %v1241 = vadd.f32 %v1064, %v1233
  %1242 = vrot.lane.b32.xlu0 %v20, 110
  %v1243 = vpop.permute.xlu0 %1242
  %1244 = vrot.lane.b32.xlu0 %v21, 110
  %v1245 = vpop.permute.xlu0 %1244
  %1246 = vrot.lane.b32.xlu0 %v22, 110
  %v1247 = vpop.permute.xlu0 %1246
  %vm1248 = vcmp.lt.s32.totalorder %v30, 110
  %v1249 = vsel %vm1248, %v1245, %v1247
  %v1250 = vsel %vm1248, %v1243, %v1245
  %v1251 = vsel %vm1248, %v1247, %v1243
  %s1252 = scalar_lea.vmem %s1, 112
  %v1253 = vld [vmem:[%s1252] sm:$0xff]
  %v1254 = vld [vmem:[%s1252 + $0x8] sm:$0xff]
  %v1256 = vsel %vm50, %v1253, 0
  %v1259 = vsel %vm50, %v1254, 0
  %1261 = vmatprep.subr.mxu0 0.0
  %1262 = vmatpush1.msra.mxu0 0.0
  %1263 = vmatprep.subr.mxu0 0.0
  %1264 = vmatpush1.msra.mxu0 0.0
  %1265 = vmatprep.subr.mxu0 0.0
  %1266 = vmatpush1.msra.mxu0 0.0
  %1267 = vmatprep.subr.mxu0 0.0
  %1268 = vmatpush1.msra.mxu0 0.0
  %1269 = vmatprep.subr.mxu0 0.0
  %1270 = vmatpush1.msra.mxu0 0.0
  %1271 = vmatprep.subr.mxu0 0.0
  %1272 = vmatpush1.msra.mxu0 0.0
  %1273 = vmatprep.subr.mxu0 0.0
  %1274 = vmatpush1.msra.mxu0 0.0
  %1275 = vmatprep.subr.mxu0 0.0
  %1276 = vmatpush1.msra.mxu0 0.0
  %1277 = vmatprep.subr.mxu0 0.0
  %1278 = vmatpush1.msra.mxu0 0.0
  %1279 = vmatprep.subr.mxu0 0.0
  %1280 = vmatpush1.msra.mxu0 0.0
  %1281 = vmatprep.subr.mxu0 0.0
  %1282 = vmatpush1.msra.mxu0 0.0
  %1283 = vmatprep.subr.mxu0 0.0
  %1284 = vmatpush1.msra.mxu0 0.0
  %1285 = vmatprep.subr.mxu0 0.0
  %1286 = vmatpush1.msra.mxu0 0.0
  %1287 = vmatprep.subr.mxu0 0.0
  %1288 = vmatpush1.msra.mxu0 0.0
  %1289 = vmatprep.subr.mxu0 0.0
  %1290 = vmatpush1.msra.mxu0 0.0
  %1291 = vmatprep.subr.mxu0 %v1249
  %1292 = vmatpush1.msra.mxu0 %v1250
  %1293 = vmatprep.subr.mxu0 0.0
  %1294 = vmatpush2.msra.mxu0 0.0
  %1295 = vmatprep.subr.mxu0 0.0
  %1296 = vmatpush2.msra.mxu0 0.0
  %1297 = vmatprep.subr.mxu0 0.0
  %1298 = vmatpush2.msra.mxu0 0.0
  %1299 = vmatprep.subr.mxu0 0.0
  %1300 = vmatpush2.msra.mxu0 0.0
  %1301 = vmatprep.subr.mxu0 0.0
  %1302 = vmatpush2.msra.mxu0 0.0
  %1303 = vmatprep.subr.mxu0 0.0
  %1304 = vmatpush2.msra.mxu0 0.0
  %1305 = vmatprep.subr.mxu0 0.0
  %1306 = vmatpush2.msra.mxu0 0.0
  %1307 = vmatprep.subr.mxu0 0.0
  %1308 = vmatpush2.msra.mxu0 0.0
  %1309 = vmatprep.subr.mxu0 0.0
  %1310 = vmatpush2.msra.mxu0 0.0
  %1311 = vmatprep.subr.mxu0 0.0
  %1312 = vmatpush2.msra.mxu0 0.0
  %1313 = vmatprep.subr.mxu0 0.0
  %1314 = vmatpush2.msra.mxu0 0.0
  %1315 = vmatprep.subr.mxu0 0.0
  %1316 = vmatpush2.msra.mxu0 0.0
  %1317 = vmatprep.subr.mxu0 0.0
  %1318 = vmatpush2.msra.mxu0 0.0
  %1319 = vmatprep.subr.mxu0 0.0
  %1320 = vmatpush2.msra.mxu0 0.0
  %1321 = vmatprep.subr.mxu0 0.0
  %1322 = vmatpush2.msra.mxu0 0.0
  %1323 = vmatprep.subr.mxu0 0.0
  %1324 = vmatpush2.msra.mxu0 0.0
  %1325 = vmatprep.mubr.f32.mxu0 0.0
  %1326 = vmatmul.mubr.f32.gmra.mxu0 %v1256
  %v1327 = vpop.f32.mrf.mxu0
  %v1328 = vadd.f32 0.0, %v1327
  %v1329 = vpop.f32.mrf.mxu0
  %v1330 = vadd.f32 0.0, %v1329
  %1331 = vmatprep.mubr.f32.mxu0 0.0
  %1332 = vmatmul.mubr.f32.gmra.mxu0 %v1259
  %v1333 = vpop.f32.mrf.mxu0
  %v1334 = vadd.f32 0.0, %v1333
  %v1335 = vpop.f32.mrf.mxu0
  %v1336 = vadd.f32 0.0, %v1335
  %1337 = vdwg.mxu0
  %1338 = vmatprep.subr.mxu0 0.0
  %1339 = vmatpush1.msra.mxu0 0.0
  %1340 = vmatprep.subr.mxu0 0.0
  %1341 = vmatpush1.msra.mxu0 0.0
  %1342 = vmatprep.subr.mxu0 0.0
  %1343 = vmatpush1.msra.mxu0 0.0
  %1344 = vmatprep.subr.mxu0 0.0
  %1345 = vmatpush1.msra.mxu0 0.0
  %1346 = vmatprep.subr.mxu0 0.0
  %1347 = vmatpush1.msra.mxu0 0.0
  %1348 = vmatprep.subr.mxu0 0.0
  %1349 = vmatpush1.msra.mxu0 0.0
  %1350 = vmatprep.subr.mxu0 0.0
  %1351 = vmatpush1.msra.mxu0 0.0
  %1352 = vmatprep.subr.mxu0 0.0
  %1353 = vmatpush1.msra.mxu0 0.0
  %1354 = vmatprep.subr.mxu0 0.0
  %1355 = vmatpush1.msra.mxu0 0.0
  %1356 = vmatprep.subr.mxu0 0.0
  %1357 = vmatpush1.msra.mxu0 0.0
  %1358 = vmatprep.subr.mxu0 0.0
  %1359 = vmatpush1.msra.mxu0 0.0
  %1360 = vmatprep.subr.mxu0 0.0
  %1361 = vmatpush1.msra.mxu0 0.0
  %1362 = vmatprep.subr.mxu0 0.0
  %1363 = vmatpush1.msra.mxu0 0.0
  %1364 = vmatprep.subr.mxu0 0.0
  %1365 = vmatpush1.msra.mxu0 0.0
  %1366 = vmatprep.subr.mxu0 0.0
  %1367 = vmatpush1.msra.mxu0 0.0
  %1368 = vmatprep.subr.mxu0 0.0
  %1369 = vmatpush1.msra.mxu0 %v1251
  %1370 = vmatprep.subr.mxu0 0.0
  %1371 = vmatpush2.msra.mxu0 0.0
  %1372 = vmatprep.subr.mxu0 0.0
  %1373 = vmatpush2.msra.mxu0 0.0
  %1374 = vmatprep.subr.mxu0 0.0
  %1375 = vmatpush2.msra.mxu0 0.0
  %1376 = vmatprep.subr.mxu0 0.0
  %1377 = vmatpush2.msra.mxu0 0.0
  %1378 = vmatprep.subr.mxu0 0.0
  %1379 = vmatpush2.msra.mxu0 0.0
  %1380 = vmatprep.subr.mxu0 0.0
  %1381 = vmatpush2.msra.mxu0 0.0
  %1382 = vmatprep.subr.mxu0 0.0
  %1383 = vmatpush2.msra.mxu0 0.0
  %1384 = vmatprep.subr.mxu0 0.0
  %1385 = vmatpush2.msra.mxu0 0.0
  %1386 = vmatprep.subr.mxu0 0.0
  %1387 = vmatpush2.msra.mxu0 0.0
  %1388 = vmatprep.subr.mxu0 0.0
  %1389 = vmatpush2.msra.mxu0 0.0
  %1390 = vmatprep.subr.mxu0 0.0
  %1391 = vmatpush2.msra.mxu0 0.0
  %1392 = vmatprep.subr.mxu0 0.0
  %1393 = vmatpush2.msra.mxu0 0.0
  %1394 = vmatprep.subr.mxu0 0.0
  %1395 = vmatpush2.msra.mxu0 0.0
  %1396 = vmatprep.subr.mxu0 0.0
  %1397 = vmatpush2.msra.mxu0 0.0
  %1398 = vmatprep.subr.mxu0 0.0
  %1399 = vmatpush2.msra.mxu0 0.0
  %1400 = vmatprep.subr.mxu0 0.0
  %1401 = vmatpush2.msra.mxu0 0.0
  %1402 = vmatprep.mubr.f32.mxu0 0.0
  %1403 = vmatmul.mubr.f32.gmra.mxu0 %v1256
  %v1404 = vpop.f32.mrf.mxu0
  %v1405 = vadd.f32 0.0, %v1404
  %v1406 = vpop.f32.mrf.mxu0
  %1407 = vmatprep.mubr.f32.mxu0 0.0
  %1408 = vmatmul.mubr.f32.gmra.mxu0 %v1259
  %v1409 = vpop.f32.mrf.mxu0
  %v1410 = vadd.f32 0.0, %v1409
  %v1411 = vpop.f32.mrf.mxu0
  %1412 = vdwg.mxu0
  %v1413 = vadd.f32 %v1236, %v1328
  %v1414 = vadd.f32 %v1237, %v1330
  %v1415 = vadd.f32 %v1238, %v1405
  %v1416 = vadd.f32 %v1239, %v1334
  %v1417 = vadd.f32 %v1240, %v1336
  %v1418 = vadd.f32 %v1241, %v1410
  %1419 = vrot.lane.b32.xlu0 %v20, 109
  %v1420 = vpop.permute.xlu0 %1419
  %1421 = vrot.lane.b32.xlu0 %v21, 109
  %v1422 = vpop.permute.xlu0 %1421
  %1423 = vrot.lane.b32.xlu0 %v22, 109
  %v1424 = vpop.permute.xlu0 %1423
  %vm1425 = vcmp.lt.s32.totalorder %v30, 109
  %v1426 = vsel %vm1425, %v1422, %v1424
  %v1427 = vsel %vm1425, %v1420, %v1422
  %v1428 = vsel %vm1425, %v1424, %v1420
  %s1429 = scalar_lea.vmem %s1, 128
  %v1430 = vld [vmem:[%s1429] sm:$0xff]
  %v1431 = vld [vmem:[%s1429 + $0x8] sm:$0xff]
  %v1433 = vsel %vm50, %v1430, 0
  %v1436 = vsel %vm50, %v1431, 0
  %1438 = vmatprep.subr.mxu0 0.0
  %1439 = vmatpush1.msra.mxu0 0.0
  %1440 = vmatprep.subr.mxu0 0.0
  %1441 = vmatpush1.msra.mxu0 0.0
  %1442 = vmatprep.subr.mxu0 0.0
  %1443 = vmatpush1.msra.mxu0 0.0
  %1444 = vmatprep.subr.mxu0 0.0
  %1445 = vmatpush1.msra.mxu0 0.0
  %1446 = vmatprep.subr.mxu0 0.0
  %1447 = vmatpush1.msra.mxu0 0.0
  %1448 = vmatprep.subr.mxu0 0.0
  %1449 = vmatpush1.msra.mxu0 0.0
  %1450 = vmatprep.subr.mxu0 0.0
  %1451 = vmatpush1.msra.mxu0 0.0
  %1452 = vmatprep.subr.mxu0 0.0
  %1453 = vmatpush1.msra.mxu0 0.0
  %1454 = vmatprep.subr.mxu0 0.0
  %1455 = vmatpush1.msra.mxu0 0.0
  %1456 = vmatprep.subr.mxu0 0.0
  %1457 = vmatpush1.msra.mxu0 0.0
  %1458 = vmatprep.subr.mxu0 0.0
  %1459 = vmatpush1.msra.mxu0 0.0
  %1460 = vmatprep.subr.mxu0 0.0
  %1461 = vmatpush1.msra.mxu0 0.0
  %1462 = vmatprep.subr.mxu0 0.0
  %1463 = vmatpush1.msra.mxu0 0.0
  %1464 = vmatprep.subr.mxu0 0.0
  %1465 = vmatpush1.msra.mxu0 0.0
  %1466 = vmatprep.subr.mxu0 0.0
  %1467 = vmatpush1.msra.mxu0 0.0
  %1468 = vmatprep.subr.mxu0 %v1426
  %1469 = vmatpush1.msra.mxu0 %v1427
  %1470 = vmatprep.subr.mxu0 0.0
  %1471 = vmatpush2.msra.mxu0 0.0
  %1472 = vmatprep.subr.mxu0 0.0
  %1473 = vmatpush2.msra.mxu0 0.0
  %1474 = vmatprep.subr.mxu0 0.0
  %1475 = vmatpush2.msra.mxu0 0.0
  %1476 = vmatprep.subr.mxu0 0.0
  %1477 = vmatpush2.msra.mxu0 0.0
  %1478 = vmatprep.subr.mxu0 0.0
  %1479 = vmatpush2.msra.mxu0 0.0
  %1480 = vmatprep.subr.mxu0 0.0
  %1481 = vmatpush2.msra.mxu0 0.0
  %1482 = vmatprep.subr.mxu0 0.0
  %1483 = vmatpush2.msra.mxu0 0.0
  %1484 = vmatprep.subr.mxu0 0.0
  %1485 = vmatpush2.msra.mxu0 0.0
  %1486 = vmatprep.subr.mxu0 0.0
  %1487 = vmatpush2.msra.mxu0 0.0
  %1488 = vmatprep.subr.mxu0 0.0
  %1489 = vmatpush2.msra.mxu0 0.0
  %1490 = vmatprep.subr.mxu0 0.0
  %1491 = vmatpush2.msra.mxu0 0.0
  %1492 = vmatprep.subr.mxu0 0.0
  %1493 = vmatpush2.msra.mxu0 0.0
  %1494 = vmatprep.subr.mxu0 0.0
  %1495 = vmatpush2.msra.mxu0 0.0
  %1496 = vmatprep.subr.mxu0 0.0
  %1497 = vmatpush2.msra.mxu0 0.0
  %1498 = vmatprep.subr.mxu0 0.0
  %1499 = vmatpush2.msra.mxu0 0.0
  %1500 = vmatprep.subr.mxu0 0.0
  %1501 = vmatpush2.msra.mxu0 0.0
  %1502 = vmatprep.mubr.f32.mxu0 0.0
  %1503 = vmatmul.mubr.f32.gmra.mxu0 %v1433
  %v1504 = vpop.f32.mrf.mxu0
  %v1505 = vadd.f32 0.0, %v1504
  %v1506 = vpop.f32.mrf.mxu0
  %v1507 = vadd.f32 0.0, %v1506
  %1508 = vmatprep.mubr.f32.mxu0 0.0
  %1509 = vmatmul.mubr.f32.gmra.mxu0 %v1436
  %v1510 = vpop.f32.mrf.mxu0
  %v1511 = vadd.f32 0.0, %v1510
  %v1512 = vpop.f32.mrf.mxu0
  %v1513 = vadd.f32 0.0, %v1512
  %1514 = vdwg.mxu0
  %1515 = vmatprep.subr.mxu0 0.0
  %1516 = vmatpush1.msra.mxu0 0.0
  %1517 = vmatprep.subr.mxu0 0.0
  %1518 = vmatpush1.msra.mxu0 0.0
  %1519 = vmatprep.subr.mxu0 0.0
  %1520 = vmatpush1.msra.mxu0 0.0
  %1521 = vmatprep.subr.mxu0 0.0
  %1522 = vmatpush1.msra.mxu0 0.0
  %1523 = vmatprep.subr.mxu0 0.0
  %1524 = vmatpush1.msra.mxu0 0.0
  %1525 = vmatprep.subr.mxu0 0.0
  %1526 = vmatpush1.msra.mxu0 0.0
  %1527 = vmatprep.subr.mxu0 0.0
  %1528 = vmatpush1.msra.mxu0 0.0
  %1529 = vmatprep.subr.mxu0 0.0
  %1530 = vmatpush1.msra.mxu0 0.0
  %1531 = vmatprep.subr.mxu0 0.0
  %1532 = vmatpush1.msra.mxu0 0.0
  %1533 = vmatprep.subr.mxu0 0.0
  %1534 = vmatpush1.msra.mxu0 0.0
  %1535 = vmatprep.subr.mxu0 0.0
  %1536 = vmatpush1.msra.mxu0 0.0
  %1537 = vmatprep.subr.mxu0 0.0
  %1538 = vmatpush1.msra.mxu0 0.0
  %1539 = vmatprep.subr.mxu0 0.0
  %1540 = vmatpush1.msra.mxu0 0.0
  %1541 = vmatprep.subr.mxu0 0.0
  %1542 = vmatpush1.msra.mxu0 0.0
  %1543 = vmatprep.subr.mxu0 0.0
  %1544 = vmatpush1.msra.mxu0 0.0
  %1545 = vmatprep.subr.mxu0 0.0
  %1546 = vmatpush1.msra.mxu0 %v1428
  %1547 = vmatprep.subr.mxu0 0.0
  %1548 = vmatpush2.msra.mxu0 0.0
  %1549 = vmatprep.subr.mxu0 0.0
  %1550 = vmatpush2.msra.mxu0 0.0
  %1551 = vmatprep.subr.mxu0 0.0
  %1552 = vmatpush2.msra.mxu0 0.0
  %1553 = vmatprep.subr.mxu0 0.0
  %1554 = vmatpush2.msra.mxu0 0.0
  %1555 = vmatprep.subr.mxu0 0.0
  %1556 = vmatpush2.msra.mxu0 0.0
  %1557 = vmatprep.subr.mxu0 0.0
  %1558 = vmatpush2.msra.mxu0 0.0
  %1559 = vmatprep.subr.mxu0 0.0
  %1560 = vmatpush2.msra.mxu0 0.0
  %1561 = vmatprep.subr.mxu0 0.0
  %1562 = vmatpush2.msra.mxu0 0.0
  %1563 = vmatprep.subr.mxu0 0.0
  %1564 = vmatpush2.msra.mxu0 0.0
  %1565 = vmatprep.subr.mxu0 0.0
  %1566 = vmatpush2.msra.mxu0 0.0
  %1567 = vmatprep.subr.mxu0 0.0
  %1568 = vmatpush2.msra.mxu0 0.0
  %1569 = vmatprep.subr.mxu0 0.0
  %1570 = vmatpush2.msra.mxu0 0.0
  %1571 = vmatprep.subr.mxu0 0.0
  %1572 = vmatpush2.msra.mxu0 0.0
  %1573 = vmatprep.subr.mxu0 0.0
  %1574 = vmatpush2.msra.mxu0 0.0
  %1575 = vmatprep.subr.mxu0 0.0
  %1576 = vmatpush2.msra.mxu0 0.0
  %1577 = vmatprep.subr.mxu0 0.0
  %1578 = vmatpush2.msra.mxu0 0.0
  %1579 = vmatprep.mubr.f32.mxu0 0.0
  %1580 = vmatmul.mubr.f32.gmra.mxu0 %v1433
  %v1581 = vpop.f32.mrf.mxu0
  %v1582 = vadd.f32 0.0, %v1581
  %v1583 = vpop.f32.mrf.mxu0
  %1584 = vmatprep.mubr.f32.mxu0 0.0
  %1585 = vmatmul.mubr.f32.gmra.mxu0 %v1436
  %v1586 = vpop.f32.mrf.mxu0
  %v1587 = vadd.f32 0.0, %v1586
  %v1588 = vpop.f32.mrf.mxu0
  %1589 = vdwg.mxu0
  %v1590 = vadd.f32 %v1413, %v1505
  %v1591 = vadd.f32 %v1414, %v1507
  %v1592 = vadd.f32 %v1415, %v1582
  %v1593 = vadd.f32 %v1416, %v1511
  %v1594 = vadd.f32 %v1417, %v1513
  %v1595 = vadd.f32 %v1418, %v1587
  %v1596 = vld [vmem:[%s2] sm:$0xff]
  %v1597 = vld [vmem:[%s2 + $0x8] sm:$0xff]
  %v1598 = vld [vmem:[%s4] sm:$0x7]
  %1600 = vset.pattern.permute.xlu0 0
  %1601 = vperm.xlu0 %1600, %v1596
  %v1602 = vpop.permute.xlu0 %1601
  %1605 = vset.pattern.permute.xlu0 0
  %1606 = vperm.xlu0 %1605, %v1597
  %v1607 = vpop.permute.xlu0 %1606
  %v1609 = vadd.f32 %v1590, %v1602
  %v1610 = vadd.f32 %v1591, %v1602
  %v1611 = vadd.f32 %v1592, %v1602
  %v1612 = vadd.f32 %v1593, %v1607
  %v1613 = vadd.f32 %v1594, %v1607
  %v1614 = vadd.f32 %v1595, %v1607
  %v1615 = vmax.f32 %v1609, 0.0
  %v1616 = vmax.f32 %v1610, 0.0
  %v1617 = vmax.f32 %v1611, 0.0
  %v1618 = vmax.f32 %v1612, 0.0
  %v1619 = vmax.f32 %v1613, 0.0
  %v1620 = vmax.f32 %v1614, 0.0
  %v1622 = vlaneseq
  %v1623 = vshrl.u32 %v1622, 7
  %v1624 = vsub.s32 0, %v1623
  %v1625 = vrot.slane %v1598, %v1624
  %v1626 = vlaneseq
  %v1627 = vshrl.u32 %v1626, 7
  %v1628 = vsub.s32 1, %v1627
  %v1629 = vrot.slane %v1598, %v1628
  %v1630 = vlaneseq
  %v1631 = vshrl.u32 %v1630, 7
  %v1632 = vsub.s32 2, %v1631
  %v1633 = vrot.slane %v1598, %v1632
  %v1637 = vmul.f32 %v1615, %v1625
  %v1638 = vmul.f32 %v1616, %v1629
  %v1639 = vmul.f32 %v1617, %v1633
  %v1640 = vmul.f32 %v1618, %v1625
  %v1641 = vmul.f32 %v1619, %v1629
  %v1642 = vmul.f32 %v1620, %v1633
  %v1643 = vadd.f32 %v1637, %v1638
  %v1644 = vadd.f32 %v1643, %v1639
  %1645 = vadd.xlane.f32.xlu0 %v1644
  %v1646 = vpop.xlane.xlu0 %1645
  %v1647 = vadd.f32 %v1640, %v1641
  %v1648 = vadd.f32 %v1647, %v1642
  %1649 = vadd.xlane.f32.xlu0 %v1648
  %v1650 = vpop.xlane.xlu0 %1649
  %v1651 = vmul.f32 %v1646, 0.00390625
  %v1652 = vmul.f32 %v1650, 0.00390625
  %v1653 = vmul.f32 %v1637, %v1637
  %v1654 = vmul.f32 %v1638, %v1638
  %v1655 = vmul.f32 %v1639, %v1639
  %v1656 = vmul.f32 %v1640, %v1640
  %v1657 = vmul.f32 %v1641, %v1641
  %v1658 = vmul.f32 %v1642, %v1642
  %v1659 = vadd.f32 %v1653, %v1654
  %v1660 = vadd.f32 %v1659, %v1655
  %1661 = vadd.xlane.f32.xlu0 %v1660
  %v1662 = vpop.xlane.xlu0 %1661
  %v1663 = vadd.f32 %v1656, %v1657
  %v1664 = vadd.f32 %v1663, %v1658
  %1665 = vadd.xlane.f32.xlu0 %v1664
  %v1666 = vpop.xlane.xlu0 %1665
  %v1667 = vmul.f32 %v1662, 0.00390625
  %v1668 = vmul.f32 %v1666, 0.00390625
  %v1669 = vmul.f32 %v1651, %v1651
  %v1670 = vmul.f32 %v1652, %v1652
  %v1671 = vsub.f32 %v1667, %v1669
  %v1672 = vsub.f32 %v1668, %v1670
  %v1673 = vmax.f32 %v1671, 0.0
  %v1674 = vmax.f32 %v1672, 0.0
  %v1675 = vsub.f32 %v1637, %v1651
  %v1676 = vsub.f32 %v1638, %v1651
  %v1677 = vsub.f32 %v1639, %v1651
  %v1678 = vsub.f32 %v1640, %v1652
  %v1679 = vsub.f32 %v1641, %v1652
  %v1680 = vsub.f32 %v1642, %v1652
  %1681 = vset.pattern.permute.xlu0 1
  %1682 = vperm.xlu0 %1681, %v1596
  %v1683 = vpop.permute.xlu0 %1682
  %1685 = vset.pattern.permute.xlu0 1
  %1686 = vperm.xlu0 %1685, %v1597
  %v1687 = vpop.permute.xlu0 %1686
  %v1689 = vmul.f32 %v1683, %v1675
  %v1690 = vmul.f32 %v1683, %v1676
  %v1691 = vmul.f32 %v1683, %v1677
  %v1692 = vmul.f32 %v1687, %v1678
  %v1693 = vmul.f32 %v1687, %v1679
  %v1694 = vmul.f32 %v1687, %v1680
  %v1695 = vadd.f32 %v1673, 1e-05
  %v1696 = vadd.f32 %v1674, 1e-05
  %v1697 = vrsqrt.pop %v1695
  %v1698 = vrsqrt.pop %v1696
  %v1699 = vmul.f32 %v1689, %v1697
  %v1700 = vmul.f32 %v1690, %v1697
  %v1701 = vmul.f32 %v1691, %v1697
  %v1702 = vmul.f32 %v1692, %v1698
  %v1703 = vmul.f32 %v1693, %v1698
  %v1704 = vmul.f32 %v1694, %v1698
  %1705 = vset.pattern.permute.xlu0 2
  %1706 = vperm.xlu0 %1705, %v1596
  %v1707 = vpop.permute.xlu0 %1706
  %1709 = vset.pattern.permute.xlu0 2
  %1710 = vperm.xlu0 %1709, %v1597
  %v1711 = vpop.permute.xlu0 %1710
  %v1713 = vadd.f32 %v1699, %v1707
  %v1714 = vadd.f32 %v1700, %v1707
  %v1715 = vadd.f32 %v1701, %v1707
  %v1716 = vadd.f32 %v1702, %v1711
  %v1717 = vadd.f32 %v1703, %v1711
  %v1718 = vadd.f32 %v1704, %v1711
  %v1719 = vadd.f32 %v1713, %v1716
  %v1720 = vadd.f32 %v1714, %v1717
  %v1721 = vadd.f32 %v1715, %v1718
  %v1722 = vmax.f32 %v1719, 0.0
  %v1723 = vmax.f32 %v1720, 0.0
  %v1724 = vmax.f32 %v1721, 0.0
  %v1725 = vld [vmem:[%s3] sm:$0x1]
  %1727 = vset.pattern.permute.xlu0 8
  %1728 = vperm.xlu0 %1727, %v1725
  %v1729 = vpop.permute.xlu0 %1728
  %v1731 = vlaneseq
  %v1732 = vshrl.u32 %v1731, 7
  %v1733 = vsub.s32 0, %v1732
  %v1734 = vrot.slane %v1729, %v1733
  %v1735 = vsel %vm50, %v1725, 0
  %1737 = vmatprep.subr.mxu0 0.0
  %1738 = vmatpush1.msra.mxu0 0.0
  %1739 = vmatprep.subr.mxu0 0.0
  %1740 = vmatpush1.msra.mxu0 0.0
  %1741 = vmatprep.subr.mxu0 0.0
  %1742 = vmatpush1.msra.mxu0 0.0
  %1743 = vmatprep.subr.mxu0 0.0
  %1744 = vmatpush1.msra.mxu0 0.0
  %1745 = vmatprep.subr.mxu0 0.0
  %1746 = vmatpush1.msra.mxu0 0.0
  %1747 = vmatprep.subr.mxu0 0.0
  %1748 = vmatpush1.msra.mxu0 0.0
  %1749 = vmatprep.subr.mxu0 0.0
  %1750 = vmatpush1.msra.mxu0 0.0
  %1751 = vmatprep.subr.mxu0 0.0
  %1752 = vmatpush1.msra.mxu0 0.0
  %1753 = vmatprep.subr.mxu0 0.0
  %1754 = vmatpush1.msra.mxu0 0.0
  %1755 = vmatprep.subr.mxu0 0.0
  %1756 = vmatpush1.msra.mxu0 0.0
  %1757 = vmatprep.subr.mxu0 0.0
  %1758 = vmatpush1.msra.mxu0 0.0
  %1759 = vmatprep.subr.mxu0 0.0
  %1760 = vmatpush1.msra.mxu0 0.0
  %1761 = vmatprep.subr.mxu0 0.0
  %1762 = vmatpush1.msra.mxu0 0.0
  %1763 = vmatprep.subr.mxu0 0.0
  %1764 = vmatpush1.msra.mxu0 0.0
  %1765 = vmatprep.subr.mxu0 0.0
  %1766 = vmatpush1.msra.mxu0 0.0
  %1767 = vmatprep.subr.mxu0 %v1723
  %1768 = vmatpush1.msra.mxu0 %v1722
  %1769 = vmatprep.subr.mxu0 0.0
  %1770 = vmatpush2.msra.mxu0 0.0
  %1771 = vmatprep.subr.mxu0 0.0
  %1772 = vmatpush2.msra.mxu0 0.0
  %1773 = vmatprep.subr.mxu0 0.0
  %1774 = vmatpush2.msra.mxu0 0.0
  %1775 = vmatprep.subr.mxu0 0.0
  %1776 = vmatpush2.msra.mxu0 0.0
  %1777 = vmatprep.subr.mxu0 0.0
  %1778 = vmatpush2.msra.mxu0 0.0
  %1779 = vmatprep.subr.mxu0 0.0
  %1780 = vmatpush2.msra.mxu0 0.0
  %1781 = vmatprep.subr.mxu0 0.0
  %1782 = vmatpush2.msra.mxu0 0.0
  %1783 = vmatprep.subr.mxu0 0.0
  %1784 = vmatpush2.msra.mxu0 0.0
  %1785 = vmatprep.subr.mxu0 0.0
  %1786 = vmatpush2.msra.mxu0 0.0
  %1787 = vmatprep.subr.mxu0 0.0
  %1788 = vmatpush2.msra.mxu0 0.0
  %1789 = vmatprep.subr.mxu0 0.0
  %1790 = vmatpush2.msra.mxu0 0.0
  %1791 = vmatprep.subr.mxu0 0.0
  %1792 = vmatpush2.msra.mxu0 0.0
  %1793 = vmatprep.subr.mxu0 0.0
  %1794 = vmatpush2.msra.mxu0 0.0
  %1795 = vmatprep.subr.mxu0 0.0
  %1796 = vmatpush2.msra.mxu0 0.0
  %1797 = vmatprep.subr.mxu0 0.0
  %1798 = vmatpush2.msra.mxu0 0.0
  %1799 = vmatprep.subr.mxu0 0.0
  %1800 = vmatpush2.msra.mxu0 0.0
  %1801 = vmatprep.mubr.f32.mxu0 0.0
  %1802 = vmatmul.mubr.f32.gmra.mxu0 %v1735
  %v1803 = vpop.f32.mrf.mxu0
  %v1804 = vadd.f32 %v1734, %v1803
  %v1805 = vpop.f32.mrf.mxu0
  %v1806 = vadd.f32 %v1734, %v1805
  %1807 = vdwg.mxu0
  %1808 = vmatprep.subr.mxu0 0.0
  %1809 = vmatpush1.msra.mxu0 0.0
  %1810 = vmatprep.subr.mxu0 0.0
  %1811 = vmatpush1.msra.mxu0 0.0
  %1812 = vmatprep.subr.mxu0 0.0
  %1813 = vmatpush1.msra.mxu0 0.0
  %1814 = vmatprep.subr.mxu0 0.0
  %1815 = vmatpush1.msra.mxu0 0.0
  %1816 = vmatprep.subr.mxu0 0.0
  %1817 = vmatpush1.msra.mxu0 0.0
  %1818 = vmatprep.subr.mxu0 0.0
  %1819 = vmatpush1.msra.mxu0 0.0
  %1820 = vmatprep.subr.mxu0 0.0
  %1821 = vmatpush1.msra.mxu0 0.0
  %1822 = vmatprep.subr.mxu0 0.0
  %1823 = vmatpush1.msra.mxu0 0.0
  %1824 = vmatprep.subr.mxu0 0.0
  %1825 = vmatpush1.msra.mxu0 0.0
  %1826 = vmatprep.subr.mxu0 0.0
  %1827 = vmatpush1.msra.mxu0 0.0
  %1828 = vmatprep.subr.mxu0 0.0
  %1829 = vmatpush1.msra.mxu0 0.0
  %1830 = vmatprep.subr.mxu0 0.0
  %1831 = vmatpush1.msra.mxu0 0.0
  %1832 = vmatprep.subr.mxu0 0.0
  %1833 = vmatpush1.msra.mxu0 0.0
  %1834 = vmatprep.subr.mxu0 0.0
  %1835 = vmatpush1.msra.mxu0 0.0
  %1836 = vmatprep.subr.mxu0 0.0
  %1837 = vmatpush1.msra.mxu0 0.0
  %1838 = vmatprep.subr.mxu0 0.0
  %1839 = vmatpush1.msra.mxu0 %v1724
  %1840 = vmatprep.subr.mxu0 0.0
  %1841 = vmatpush2.msra.mxu0 0.0
  %1842 = vmatprep.subr.mxu0 0.0
  %1843 = vmatpush2.msra.mxu0 0.0
  %1844 = vmatprep.subr.mxu0 0.0
  %1845 = vmatpush2.msra.mxu0 0.0
  %1846 = vmatprep.subr.mxu0 0.0
  %1847 = vmatpush2.msra.mxu0 0.0
  %1848 = vmatprep.subr.mxu0 0.0
  %1849 = vmatpush2.msra.mxu0 0.0
  %1850 = vmatprep.subr.mxu0 0.0
  %1851 = vmatpush2.msra.mxu0 0.0
  %1852 = vmatprep.subr.mxu0 0.0
  %1853 = vmatpush2.msra.mxu0 0.0
  %1854 = vmatprep.subr.mxu0 0.0
  %1855 = vmatpush2.msra.mxu0 0.0
  %1856 = vmatprep.subr.mxu0 0.0
  %1857 = vmatpush2.msra.mxu0 0.0
  %1858 = vmatprep.subr.mxu0 0.0
  %1859 = vmatpush2.msra.mxu0 0.0
  %1860 = vmatprep.subr.mxu0 0.0
  %1861 = vmatpush2.msra.mxu0 0.0
  %1862 = vmatprep.subr.mxu0 0.0
  %1863 = vmatpush2.msra.mxu0 0.0
  %1864 = vmatprep.subr.mxu0 0.0
  %1865 = vmatpush2.msra.mxu0 0.0
  %1866 = vmatprep.subr.mxu0 0.0
  %1867 = vmatpush2.msra.mxu0 0.0
  %1868 = vmatprep.subr.mxu0 0.0
  %1869 = vmatpush2.msra.mxu0 0.0
  %1870 = vmatprep.subr.mxu0 0.0
  %1871 = vmatpush2.msra.mxu0 0.0
  %1872 = vmatprep.mubr.f32.mxu0 0.0
  %1873 = vmatmul.mubr.f32.gmra.mxu0 %v1735
  %v1874 = vpop.f32.mrf.mxu0
  %v1875 = vadd.f32 %v1734, %v1874
  %v1876 = vpop.f32.mrf.mxu0
  %1877 = vdwg.mxu0
  %v1881 = vcombine.low %v1804, %v1806
  %v1883 = vunpack.c.l.s4 1966171168
  %v1884 = vunpack.c.0.s8 %v1883
  %v1885 = vlaneseq
  %v1886 = vshrl.u32 %v1885, 7
  %v1887 = vsub.s32 %v1884, %v1886
  %v1888 = vrot.slane %v1881, %v1887
  %v1890 = vunpack.c.l.s4 1966171168
  %v1891 = vunpack.c.0.s8 %v1890
  %v1892 = vlaneseq
  %v1893 = vshrl.u32 %v1892, 7
  %v1894 = vsub.s32 %v1891, %v1893
  %v1895 = vrot.slane %v1875, %v1894
  %v1896 = vcombine.low %v1888, %v1895
  %v1898 = vunpack.c.l.s4 1966171168
  %v1899 = vunpack.c.0.s8 %v1898
  %v1900 = vlaneseq
  %v1901 = vshrl.u32 %v1900, 7
  %v1902 = vsub.s32 %v1899, %v1901
  %v1903 = vrot.slane %v1896, %v1902
  %v1905 = vlaneseq
  %vm1906 = vcmp.ge.s32.totalorder %v1905, 0
  %vm1907 = vcmp.lt.s32.totalorder %v1905, 384
  %vm1908 = vmand %vm1906, %vm1907
  %1909 = vst.msk [vmem:[%s5] sm:$0x7] %vm1908, %v1903
  // Predicated region
  $region22: #{model_forward.1} parent=0 // pred_check
    _
  $region23: #{model_forward.1} parent=0 // pred_check_branch
    %1911 = sbr.rel (0) target = $region25
  $region24: #{model_forward.1} parent=0 // pred_region
    _
  $region25: #{model_forward.1} parent=0 // pred_fallthru
    _
  // Predicated region
  $region26: #{model_forward.1} parent=0 // pred_check
    _
  $region27: #{model_forward.1} parent=0 // pred_check_branch
    %1913 = sbr.rel (0) target = $region29
  $region28: #{model_forward.1} parent=0 // pred_region
    _
  $region29: #{model_forward.1} parent=0 // pred_fallthru
    _

</llo_original>
